<compile_context>
chip_gen: v7x
topology: tpu7x:2x2x1
jax: 0.10.0
libtpu: 0.0.40
codegen_flags: <defaults>
</compile_context>

<pallas_src>
import functools

import jax
import jax.numpy as jnp
from jax.experimental import pallas as pl
from jax.experimental.pallas import tpu as pltpu


def _dw_conv_kernel(x_ref, w_ref, o_ref, pad_ref, *, K, pad):
    # x_ref:   (1, H, W, tC)        input block, channels on the lane axis
    # w_ref:   (K*K, tC) float32    depthwise weights for this channel tile (VMEM)
    # o_ref:   (1, H, W, tC)        output block
    # pad_ref: (H+2p, W+2p, tC)     VMEM scratch in x dtype (zero-padded plane)
    H = o_ref.shape[1]
    W = o_ref.shape[2]
    tC = o_ref.shape[3]
    Hp = H + 2 * pad
    Wp = W + 2 * pad

    if pad > 0:
        # Zero only the thin border strips; the interior is fully overwritten below.
        pad_ref[0:pad, :, :] = jnp.zeros((pad, Wp, tC), pad_ref.dtype)
        pad_ref[Hp - pad:Hp, :, :] = jnp.zeros((pad, Wp, tC), pad_ref.dtype)
        pad_ref[pad:pad + H, 0:pad, :] = jnp.zeros((H, pad, tC), pad_ref.dtype)
        pad_ref[pad:pad + H, Wp - pad:Wp, :] = jnp.zeros((H, pad, tC), pad_ref.dtype)

    # Copy the block into the centre of the padded scratch (no wrapper-side jnp.pad,
    # no lane rotates: the pad offsets are on H/W, channels stay lane-aligned).
    pad_ref[pad:pad + H, pad:pad + W, :] = x_ref[0]

    # f32 accumulation across the K*K taps; every tap is one dense (H, W, tC) FMA.
    acc = jnp.zeros((H, W, tC), jnp.float32)
    for kh in range(K):
        for kw in range(K):
            win = pad_ref[kh:kh + H, kw:kw + W, :].astype(jnp.float32)
            tap = w_ref[kh * K + kw, :]          # (tC,) lane-aligned weight vector
            acc = acc + win * tap                # broadcast over (H, W) on the VPU
    o_ref[0] = acc.astype(o_ref.dtype)


def _pick_channel_tile(C, H, W, itemsize, budget_bytes=4 << 20):
    """Largest channel tile that keeps one (H, W, tC) block ~<= budget_bytes."""
    if H * W * C * itemsize <= budget_bytes:
        return C
    if C % 128 == 0:
        tc = 128
        while C % (tc * 2) == 0 and H * W * (tc * 2) * itemsize <= budget_bytes:
            tc *= 2
        return tc
    # TODO(synk): for very large C not divisible by 128, tile H (with a halo) instead
    # of falling back to the full-channel block.
    return C


def depthwise_conv2d(x_nchw, weight, stride=1):
    """x_nchw: (N, C, H, W); weight: (C, 1, K, K) as in nn.Conv2d(groups=C, bias=False)."""
    N, C, H, W = x_nchw.shape
    K = weight.shape[-1]
    assert weight.shape == (C, 1, K, K)
    assert stride == 1, "only stride=1 implemented"  # TODO(synk): stride>1 via strided output index_map
    assert K % 2 == 1, "padding=(K-1)//2 gives 'same' output only for odd kernel sizes"
    pad = (K - 1) // 2

    # Lane-dense channels-last layout for the kernel; these transposes are layout plumbing.
    x_nhwc = jnp.transpose(x_nchw, (0, 2, 3, 1))
    # (K*K, C) f32 weights: one row per tap, channels on the last (lane) axis.
    w2 = jnp.transpose(weight.reshape(C, K * K), (1, 0)).astype(jnp.float32)

    tC = _pick_channel_tile(C, H, W, x_nchw.dtype.itemsize)
    Hp, Wp = H + 2 * pad, W + 2 * pad
    kernel = functools.partial(_dw_conv_kernel, K=K, pad=pad)

    out_nhwc = pl.pallas_call(
        kernel,
        out_shape=jax.ShapeDtypeStruct((N, H, W, C), x_nchw.dtype),
        grid_spec=pltpu.PrefetchScalarGridSpec(
            num_scalar_prefetch=0,
            grid=(N, C // tC),
            in_specs=[
                pl.BlockSpec((1, H, W, tC), lambda n, c: (n, 0, 0, c)),
                pl.BlockSpec((K * K, tC), lambda n, c: (0, c)),
            ],
            out_specs=pl.BlockSpec((1, H, W, tC), lambda n, c: (n, 0, 0, c)),
            scratch_shapes=[pltpu.VMEM((Hp, Wp, tC), x_nchw.dtype)],
        ),
        compiler_params=pltpu.CompilerParams(
            dimension_semantics=("parallel", "parallel"),
            vmem_limit_bytes=48 * 1024 * 1024,  # fits v7x (64 MiB VMEM) as well as v5e/v6e
        ),
    )(x_nhwc, w2)

    return jnp.transpose(out_nhwc, (0, 3, 1, 2))


def _reference_dw_conv(x_nchw, weight, stride=1):
    # Pure-JAX reference (XLA conv) for correctness check.
    K = weight.shape[-1]
    pad = (K - 1) // 2
    return jax.lax.conv_general_dilated(
        x_nchw, weight,
        window_strides=(stride, stride),
        padding=((pad, pad), (pad, pad)),
        dimension_numbers=("NCHW", "OIHW", "NCHW"),
        feature_group_count=x_nchw.shape[1],
    )


if __name__ == "__main__":
    key = jax.random.PRNGKey(0)
    kx, kw = jax.random.split(key)

    N, C, H, W = 2, 4, 16, 16
    K = 3

    x = jax.random.normal(kx, (N, C, H, W), dtype=jnp.float32)
    # nn.Conv2d(C, C, K, groups=C, bias=False) weight shape: (C, 1, K, K)
    fan_in = 1 * K * K
    bound = 1.0 / (fan_in ** 0.5)
    weight = jax.random.uniform(kw, (C, 1, K, K), dtype=jnp.float32,
                                minval=-bound, maxval=bound)

    out = depthwise_conv2d(x, weight, stride=1)
    out = jax.block_until_ready(out)

    ref = jax.block_until_ready(_reference_dw_conv(x, weight, stride=1))
    assert out.shape == ref.shape == (N, C, H, W)
    assert jnp.allclose(out, ref, atol=1e-5, rtol=1e-5), "mismatch vs XLA reference"

    print("KERNEL_OK")
</pallas_src>

<mosaic_0001>
module attributes {stable_mosaic.version = 11 : i64} {
  func.func @_dw_conv_kernel(%arg0: i32, %arg1: i32, %arg2: memref<1x16x16x4xf32, #tpu.memory_space<vmem>>, %arg3: memref<9x4xf32, #tpu.memory_space<vmem>>, %arg4: memref<1x16x16x4xf32, #tpu.memory_space<vmem>>, %arg5: memref<18x18x4xf32, #tpu.memory_space<vmem>>) attributes {dimension_semantics = [#tpu.dimension_semantics<parallel>, #tpu.dimension_semantics<parallel>], iteration_bounds = array<i64: 2, 1>, scalar_prefetch = 0 : i64, scratch_operands = 1 : i64, tpu.core_type = #tpu.core_type<tc>, window_params = [{transform_indices = @transform_0, window_bounds = array<i64: 1, 16, 16, 4>}, {transform_indices = @transform_1, window_bounds = array<i64: 9, 4>}, {transform_indices = @transform_2, window_bounds = array<i64: 1, 16, 16, 4>}]} {
    %cst = arith.constant 0.000000e+00 : f32
    %0 = vector.broadcast %cst : f32 to vector<1x18x4xf32>
    %c0 = arith.constant 0 : index
    %c0_0 = arith.constant 0 : index
    %c0_1 = arith.constant 0 : index
    %1 = vector.load %arg5[%c0, %c0_0, %c0_1] : memref<18x18x4xf32, #tpu.memory_space<vmem>>, vector<1x18x4xf32>
    tpu.vector_store %arg5[%c0, %c0_0, %c0_1], %0 {strides = array<i32>} : memref<18x18x4xf32, #tpu.memory_space<vmem>>, vector<1x18x4xf32>,
    %cst_2 = arith.constant 0.000000e+00 : f32
    %2 = vector.broadcast %cst_2 : f32 to vector<1x18x4xf32>
    %c17 = arith.constant 17 : index
    %c0_3 = arith.constant 0 : index
    %c0_4 = arith.constant 0 : index
    %3 = vector.load %arg5[%c17, %c0_3, %c0_4] : memref<18x18x4xf32, #tpu.memory_space<vmem>>, vector<1x18x4xf32>
    tpu.vector_store %arg5[%c17, %c0_3, %c0_4], %2 {strides = array<i32>} : memref<18x18x4xf32, #tpu.memory_space<vmem>>, vector<1x18x4xf32>,
    %cst_5 = arith.constant 0.000000e+00 : f32
    %4 = vector.broadcast %cst_5 : f32 to vector<16x1x4xf32>
    %c1 = arith.constant 1 : index
    %c0_6 = arith.constant 0 : index
    %c0_7 = arith.constant 0 : index
    %5 = vector.load %arg5[%c1, %c0_6, %c0_7] : memref<18x18x4xf32, #tpu.memory_space<vmem>>, vector<16x1x4xf32>
    tpu.vector_store %arg5[%c1, %c0_6, %c0_7], %4 {strides = array<i32>} : memref<18x18x4xf32, #tpu.memory_space<vmem>>, vector<16x1x4xf32>,
    %cst_8 = arith.constant 0.000000e+00 : f32
    %6 = vector.broadcast %cst_8 : f32 to vector<16x1x4xf32>
    %c1_9 = arith.constant 1 : index
    %c17_10 = arith.constant 17 : index
    %c0_11 = arith.constant 0 : index
    %7 = vector.load %arg5[%c1_9, %c17_10, %c0_11] : memref<18x18x4xf32, #tpu.memory_space<vmem>>, vector<16x1x4xf32>
    tpu.vector_store %arg5[%c1_9, %c17_10, %c0_11], %6 {strides = array<i32>} : memref<18x18x4xf32, #tpu.memory_space<vmem>>, vector<16x1x4xf32>,
    %c0_12 = arith.constant 0 : index
    %c0_13 = arith.constant 0 : index
    %c0_14 = arith.constant 0 : index
    %c0_15 = arith.constant 0 : index
    %8 = vector.load %arg2[%c0_12, %c0_13, %c0_14, %c0_15] : memref<1x16x16x4xf32, #tpu.memory_space<vmem>>, vector<1x16x16x4xf32>
    %9 = vector.shape_cast %8 : vector<1x16x16x4xf32> to vector<16x16x4xf32>
    %c1_16 = arith.constant 1 : index
    %c1_17 = arith.constant 1 : index
    %c0_18 = arith.constant 0 : index
    %10 = vector.load %arg5[%c1_16, %c1_17, %c0_18] : memref<18x18x4xf32, #tpu.memory_space<vmem>>, vector<16x16x4xf32>
    tpu.vector_store %arg5[%c1_16, %c1_17, %c0_18], %9 {strides = array<i32>} : memref<18x18x4xf32, #tpu.memory_space<vmem>>, vector<16x16x4xf32>,
    %cst_19 = arith.constant 0.000000e+00 : f32
    %11 = vector.broadcast %cst_19 : f32 to vector<16x16x4xf32>
    %c0_20 = arith.constant 0 : index
    %c0_21 = arith.constant 0 : index
    %c0_22 = arith.constant 0 : index
    %12 = vector.load %arg5[%c0_20, %c0_21, %c0_22] : memref<18x18x4xf32, #tpu.memory_space<vmem>>, vector<16x16x4xf32>
    %c0_23 = arith.constant 0 : index
    %c0_24 = arith.constant 0 : index
    %13 = vector.load %arg3[%c0_23, %c0_24] : memref<9x4xf32, #tpu.memory_space<vmem>>, vector<1x4xf32>
    %14 = vector.shape_cast %13 : vector<1x4xf32> to vector<4xf32>
    %15 = vector.shape_cast %14 : vector<4xf32> to vector<1x1x4xf32>
    %16 = vector.broadcast %15 : vector<1x1x4xf32> to vector<16x16x4xf32>
    %17 = arith.mulf %12, %16 : vector<16x16x4xf32>
    %18 = arith.addf %11, %17 : vector<16x16x4xf32>
    %c0_25 = arith.constant 0 : index
    %c1_26 = arith.constant 1 : index
    %c0_27 = arith.constant 0 : index
    %19 = vector.load %arg5[%c0_25, %c1_26, %c0_27] : memref<18x18x4xf32, #tpu.memory_space<vmem>>, vector<16x16x4xf32>
    %c1_28 = arith.constant 1 : index
    %c0_29 = arith.constant 0 : index
    %20 = vector.load %arg3[%c1_28, %c0_29] : memref<9x4xf32, #tpu.memory_space<vmem>>, vector<1x4xf32>
    %21 = vector.shape_cast %20 : vector<1x4xf32> to vector<4xf32>
    %22 = vector.shape_cast %21 : vector<4xf32> to vector<1x1x4xf32>
    %23 = vector.broadcast %22 : vector<1x1x4xf32> to vector<16x16x4xf32>
    %24 = arith.mulf %19, %23 : vector<16x16x4xf32>
    %25 = arith.addf %18, %24 : vector<16x16x4xf32>
    %c0_30 = arith.constant 0 : index
    %c2 = arith.constant 2 : index
    %c0_31 = arith.constant 0 : index
    %26 = vector.load %arg5[%c0_30, %c2, %c0_31] : memref<18x18x4xf32, #tpu.memory_space<vmem>>, vector<16x16x4xf32>
    %c2_32 = arith.constant 2 : index
    %c0_33 = arith.constant 0 : index
    %27 = vector.load %arg3[%c2_32, %c0_33] : memref<9x4xf32, #tpu.memory_space<vmem>>, vector<1x4xf32>
    %28 = vector.shape_cast %27 : vector<1x4xf32> to vector<4xf32>
    %29 = vector.shape_cast %28 : vector<4xf32> to vector<1x1x4xf32>
    %30 = vector.broadcast %29 : vector<1x1x4xf32> to vector<16x16x4xf32>
    %31 = arith.mulf %26, %30 : vector<16x16x4xf32>
    %32 = arith.addf %25, %31 : vector<16x16x4xf32>
    %c1_34 = arith.constant 1 : index
    %c0_35 = arith.constant 0 : index
    %c0_36 = arith.constant 0 : index
    %33 = vector.load %arg5[%c1_34, %c0_35, %c0_36] : memref<18x18x4xf32, #tpu.memory_space<vmem>>, vector<16x16x4xf32>
    %c3 = arith.constant 3 : index
    %c0_37 = arith.constant 0 : index
    %34 = vector.load %arg3[%c3, %c0_37] : memref<9x4xf32, #tpu.memory_space<vmem>>, vector<1x4xf32>
    %35 = vector.shape_cast %34 : vector<1x4xf32> to vector<4xf32>
    %36 = vector.shape_cast %35 : vector<4xf32> to vector<1x1x4xf32>
    %37 = vector.broadcast %36 : vector<1x1x4xf32> to vector<16x16x4xf32>
    %38 = arith.mulf %33, %37 : vector<16x16x4xf32>
    %39 = arith.addf %32, %38 : vector<16x16x4xf32>
    %c1_38 = arith.constant 1 : index
    %c1_39 = arith.constant 1 : index
    %c0_40 = arith.constant 0 : index
    %40 = vector.load %arg5[%c1_38, %c1_39, %c0_40] : memref<18x18x4xf32, #tpu.memory_space<vmem>>, vector<16x16x4xf32>
    %c4 = arith.constant 4 : index
    %c0_41 = arith.constant 0 : index
    %41 = vector.load %arg3[%c4, %c0_41] : memref<9x4xf32, #tpu.memory_space<vmem>>, vector<1x4xf32>
    %42 = vector.shape_cast %41 : vector<1x4xf32> to vector<4xf32>
    %43 = vector.shape_cast %42 : vector<4xf32> to vector<1x1x4xf32>
    %44 = vector.broadcast %43 : vector<1x1x4xf32> to vector<16x16x4xf32>
    %45 = arith.mulf %40, %44 : vector<16x16x4xf32>
    %46 = arith.addf %39, %45 : vector<16x16x4xf32>
    %c1_42 = arith.constant 1 : index
    %c2_43 = arith.constant 2 : index
    %c0_44 = arith.constant 0 : index
    %47 = vector.load %arg5[%c1_42, %c2_43, %c0_44] : memref<18x18x4xf32, #tpu.memory_space<vmem>>, vector<16x16x4xf32>
    %c5 = arith.constant 5 : index
    %c0_45 = arith.constant 0 : index
    %48 = vector.load %arg3[%c5, %c0_45] : memref<9x4xf32, #tpu.memory_space<vmem>>, vector<1x4xf32>
    %49 = vector.shape_cast %48 : vector<1x4xf32> to vector<4xf32>
    %50 = vector.shape_cast %49 : vector<4xf32> to vector<1x1x4xf32>
    %51 = vector.broadcast %50 : vector<1x1x4xf32> to vector<16x16x4xf32>
    %52 = arith.mulf %47, %51 : vector<16x16x4xf32>
    %53 = arith.addf %46, %52 : vector<16x16x4xf32>
    %c2_46 = arith.constant 2 : index
    %c0_47 = arith.constant 0 : index
    %c0_48 = arith.constant 0 : index
    %54 = vector.load %arg5[%c2_46, %c0_47, %c0_48] : memref<18x18x4xf32, #tpu.memory_space<vmem>>, vector<16x16x4xf32>
    %c6 = arith.constant 6 : index
    %c0_49 = arith.constant 0 : index
    %55 = vector.load %arg3[%c6, %c0_49] : memref<9x4xf32, #tpu.memory_space<vmem>>, vector<1x4xf32>
    %56 = vector.shape_cast %55 : vector<1x4xf32> to vector<4xf32>
    %57 = vector.shape_cast %56 : vector<4xf32> to vector<1x1x4xf32>
    %58 = vector.broadcast %57 : vector<1x1x4xf32> to vector<16x16x4xf32>
    %59 = arith.mulf %54, %58 : vector<16x16x4xf32>
    %60 = arith.addf %53, %59 : vector<16x16x4xf32>
    %c2_50 = arith.constant 2 : index
    %c1_51 = arith.constant 1 : index
    %c0_52 = arith.constant 0 : index
    %61 = vector.load %arg5[%c2_50, %c1_51, %c0_52] : memref<18x18x4xf32, #tpu.memory_space<vmem>>, vector<16x16x4xf32>
    %c7 = arith.constant 7 : index
    %c0_53 = arith.constant 0 : index
    %62 = vector.load %arg3[%c7, %c0_53] : memref<9x4xf32, #tpu.memory_space<vmem>>, vector<1x4xf32>
    %63 = vector.shape_cast %62 : vector<1x4xf32> to vector<4xf32>
    %64 = vector.shape_cast %63 : vector<4xf32> to vector<1x1x4xf32>
    %65 = vector.broadcast %64 : vector<1x1x4xf32> to vector<16x16x4xf32>
    %66 = arith.mulf %61, %65 : vector<16x16x4xf32>
    %67 = arith.addf %60, %66 : vector<16x16x4xf32>
    %c2_54 = arith.constant 2 : index
    %c2_55 = arith.constant 2 : index
    %c0_56 = arith.constant 0 : index
    %68 = vector.load %arg5[%c2_54, %c2_55, %c0_56] : memref<18x18x4xf32, #tpu.memory_space<vmem>>, vector<16x16x4xf32>
    %c8 = arith.constant 8 : index
    %c0_57 = arith.constant 0 : index
    %69 = vector.load %arg3[%c8, %c0_57] : memref<9x4xf32, #tpu.memory_space<vmem>>, vector<1x4xf32>
    %70 = vector.shape_cast %69 : vector<1x4xf32> to vector<4xf32>
    %71 = vector.shape_cast %70 : vector<4xf32> to vector<1x1x4xf32>
    %72 = vector.broadcast %71 : vector<1x1x4xf32> to vector<16x16x4xf32>
    %73 = arith.mulf %68, %72 : vector<16x16x4xf32>
    %74 = arith.addf %67, %73 : vector<16x16x4xf32>
    %c0_58 = arith.constant 0 : index
    %c0_59 = arith.constant 0 : index
    %c0_60 = arith.constant 0 : index
    %c0_61 = arith.constant 0 : index
    %75 = vector.load %arg4[%c0_58, %c0_59, %c0_60, %c0_61] : memref<1x16x16x4xf32, #tpu.memory_space<vmem>>, vector<1x16x16x4xf32>
    %76 = vector.shape_cast %75 : vector<1x16x16x4xf32> to vector<16x16x4xf32>
    %77 = vector.shape_cast %74 : vector<16x16x4xf32> to vector<1x16x16x4xf32>
    tpu.vector_store %arg4[%c0_58, %c0_59, %c0_60, %c0_61], %77 {strides = array<i32>} : memref<1x16x16x4xf32, #tpu.memory_space<vmem>>, vector<1x16x16x4xf32>,
    return
  }
  func.func @transform_0(%arg0: i32, %arg1: i32) -> (i32, i32, i32, i32) {
    %c0_i32 = arith.constant 0 : i32
    %c0_i32_0 = arith.constant 0 : i32
    %c0_i32_1 = arith.constant 0 : i32
    return %arg0, %c0_i32, %c0_i32_0, %arg1 : i32, i32, i32, i32
  }
  func.func @transform_1(%arg0: i32, %arg1: i32) -> (i32, i32) {
    %c0_i32 = arith.constant 0 : i32
    %c0_i32_0 = arith.constant 0 : i32
    return %c0_i32, %arg1 : i32, i32
  }
  func.func @transform_2(%arg0: i32, %arg1: i32) -> (i32, i32, i32, i32) {
    %c0_i32 = arith.constant 0 : i32
    %c0_i32_0 = arith.constant 0 : i32
    %c0_i32_1 = arith.constant 0 : i32
    return %arg0, %c0_i32, %c0_i32_0, %arg1 : i32, i32, i32, i32
  }
}

</mosaic_0001>

<llo_original>
// kernel: tpu_custom_call.1
$region0: #{tpu_custom_call.1}
  #allocation0 [shape = 'u32[]', space=smem, size = 0x4, offset = 0x4, fixed_abs, tag = 'smem constant byte address 0x4 - core index']
  #allocation1 [shape = 'u32[144,128]{1,0:T(1,128)}', space=vmem, size = 0x12000, scoped, tag = 'internal scratch']
  #allocation2 [shape = 'f32[18,18,4]{2,1,0:T(8,128)}', space=vmem, size = 0x36000, scoped, tag = 'scratch operand']
  %s0 = inlined_call_operand.vmem [shape: f32[2,16,16,4], index: 0, kind: input, shape index: {}]
  %s1 = inlined_call_operand.vmem [shape: f32[9,4], index: 1, kind: input, shape index: {}]
  %s2 = inlined_call_operand.vmem [shape: f32[2,16,16,4], index: 2, kind: output, shape index: {}]
  %s3 = sld [smem:[#allocation0]]
  $region41: #{tpu_custom_call.1} parent=0
    _
  %s5 = ssub.s32 1, %s3
  %s6 = scalar_select 0, %s5, %s3
  loop: start=0, step=1, limit=4
  $region2: #{tpu_custom_call.1} parent=0 // loop_pre_header
    _
  $region3: #{tpu_custom_call.1} parent=0 // loop_header
    %s8 = sphi 0, %s12
    %p9 = scmp.ge.s32.totalorder %s8, 4
    %s15 = sphi 0, %s27
    %s16 = sphi 0, %s23
    %s17 = sphi 0, %s15
    %s18 = sphi 0, %s16
    %s19 = sphi 0, %s17
    %s20 = sphi 0, %s18
    %s32 = sphi 0, %s34
    %s35 = sphi 0, %s32
    %s36 = sphi 0, %s35
    %s52 = sphi 0, %s36
    %s58 = sphi 0, %s60
    %s61 = sphi 0, %s58
    %s62 = sphi 0, %s61
    %s78 = sphi 0, %s62
    %s86 = sphi 0, %s88
    %s89 = sphi 0, %s86
    %s90 = sphi 0, %s89
    %s106 = sphi 0, %s90
  $region4: #{tpu_custom_call.1} parent=0 // loop_header_branch
    %11 = sbr.rel (%p9) target = $region8
  $region5: #{tpu_custom_call.1} parent=0 // loop_body
    %s13 = ssub.s32 %s8, 1
    %s14 = ssub.s32 %s8, 2
    %s21 = sadd.s32 1, %s16
    %p22 = scmp.ge.s32.totalorder %s21, 1
    %s23 = scalar_select %p22, 0, %s21
    %s24 = sadd.s32 1, %s15
    %s25 = scalar_select %p22, %s24, %s15
    %p26 = scmp.ge.s32.totalorder %s25, 2
    %s27 = scalar_select %p26, 0, %s25
    %s28 = ssub.s32 %s15, %s27
    %s29 = ssub.s32 %s16, %s23
    %s30 = sor.u32 %s28, %s29
    %p31 = scmp.eq.s32.totalorder %s30, 0
    %s33 = sadd.s32 %s32, 1
    %s34 = scalar_select %p31, %s32, %s33
    %p37 = pneg %p31
    %p38 = scmp.eq.s32.totalorder %s8, 1
    %p39 = por %p37, %p38
    %p40 = scmp.ne.s32.totalorder %s32, %s35
    %p41 = scmp.eq.s32.totalorder %s8, 0
    %p42 = por %p40, %p41
    %p43 = scmp.ne.s32.totalorder %s32, %s35
    %p44 = scmp.eq.s32.totalorder %s13, 1
    %p45 = por %p43, %p44
    %p46 = scmp.ne.s32.totalorder %s35, %s36
    %p47 = scmp.eq.s32.totalorder %s13, 0
    %p48 = por %p46, %p47
    %p49 = scmp.ne.s32.totalorder %s35, %s36
    %p50 = scmp.eq.s32.totalorder %s14, 1
    %p51 = por %p49, %p50
    %p53 = scmp.ne.s32.totalorder %s36, %s52
    %p54 = scmp.eq.s32.totalorder %s14, 0
    %p55 = por %p53, %p54
    %s56 = ssub.s32 %s16, %s23
    %p57 = scmp.eq.s32.totalorder %s56, 0
    %s59 = sadd.s32 %s58, 1
    %s60 = scalar_select %p57, %s58, %s59
    %p63 = pneg %p57
    %p64 = scmp.eq.s32.totalorder %s8, 1
    %p65 = por %p63, %p64
    %p66 = scmp.ne.s32.totalorder %s58, %s61
    %p67 = scmp.eq.s32.totalorder %s8, 0
    %p68 = por %p66, %p67
    %p69 = scmp.ne.s32.totalorder %s58, %s61
    %p70 = scmp.eq.s32.totalorder %s13, 1
    %p71 = por %p69, %p70
    %p72 = scmp.ne.s32.totalorder %s61, %s62
    %p73 = scmp.eq.s32.totalorder %s13, 0
    %p74 = por %p72, %p73
    %p75 = scmp.ne.s32.totalorder %s61, %s62
    %p76 = scmp.eq.s32.totalorder %s14, 1
    %p77 = por %p75, %p76
    %p79 = scmp.ne.s32.totalorder %s62, %s78
    %p80 = scmp.eq.s32.totalorder %s14, 0
    %p81 = por %p79, %p80
    %s82 = ssub.s32 %s15, %s27
    %s83 = ssub.s32 %s16, %s23
    %s84 = sor.u32 %s82, %s83
    %p85 = scmp.eq.s32.totalorder %s84, 0
    %s87 = sadd.s32 %s86, 1
    %s88 = scalar_select %p85, %s86, %s87
    %p91 = pneg %p85
    %p92 = scmp.eq.s32.totalorder %s8, 1
    %p93 = por %p91, %p92
    %p94 = scmp.ne.s32.totalorder %s86, %s89
    %p95 = scmp.eq.s32.totalorder %s8, 0
    %p96 = por %p94, %p95
    %p97 = scmp.ne.s32.totalorder %s86, %s89
    %p98 = scmp.eq.s32.totalorder %s13, 1
    %p99 = por %p97, %p98
    %p100 = scmp.ne.s32.totalorder %s89, %s90
    %p101 = scmp.eq.s32.totalorder %s13, 0
    %p102 = por %p100, %p101
    %p103 = scmp.ne.s32.totalorder %s89, %s90
    %p104 = scmp.eq.s32.totalorder %s14, 1
    %p105 = por %p103, %p104
    %p107 = scmp.ne.s32.totalorder %s90, %s106
    %p108 = scmp.eq.s32.totalorder %s14, 0
    %p109 = por %p107, %p108
    %p110 = scmp.le.s32.totalorder 1, %s8
    %p111 = scmp.lt.s32.totalorder %s8, 3
    %p112 = pnand %p110, %p111
    %p113 = pneg %p112
    // Predicated region
    $region9: #{tpu_custom_call.1} parent=5 // pred_check
      _
    $region10: #{tpu_custom_call.1} parent=5 // pred_check_branch
      %115 = sbr.rel (%p112) target = $region12
    $region11: #{tpu_custom_call.1} parent=5 // pred_region
      %s116 = ssub.s32 %s8, 1
      // Predicated region
      $region13: #{tpu_custom_call.1} parent=11 // pred_check
        %p117 = pneg %p74
      $region14: #{tpu_custom_call.1} parent=11 // pred_check_branch
        %119 = sbr.rel (%p117) target = $region16
      $region15: #{tpu_custom_call.1} parent=11 // pred_region
        %p120 = scmp.lt.s32.totalorder %s18, 0
        %s121 = scalar_select %p120, %s18, 0
        %s122 = smul.addr %s121, 8
        %s123 = scalar_lea.vmem %s1, %s122
      $region16: #{tpu_custom_call.1} parent=11 // pred_fallthru
        _
    $region12: #{tpu_custom_call.1} parent=5 // pred_fallthru
      _
    %p124 = scmp.lt.s32.totalorder %s8, 2
    // Predicated region
    $region17: #{tpu_custom_call.1} parent=5 // pred_check
      %p125 = pneg %p124
    $region18: #{tpu_custom_call.1} parent=5 // pred_check_branch
      %127 = sbr.rel (%p125) target = $region20
    $region19: #{tpu_custom_call.1} parent=5 // pred_region
      // Predicated region
      $region21: #{tpu_custom_call.1} parent=19 // pred_check
        %p128 = pneg %p42
      $region22: #{tpu_custom_call.1} parent=19 // pred_check_branch
        %130 = sbr.rel (%p128) target = $region24
      $region23: #{tpu_custom_call.1} parent=19 // pred_region
        %p131 = scmp.lt.s32.totalorder %s15, 1
        %s132 = scalar_select %p131, %s15, 1
        %p133 = scmp.lt.s32.totalorder %s16, 0
        %s134 = scalar_select %p133, %s16, 0
        %s135 = smul.addr %s132, 32
        %s136 = sadd.s32 %s134, %s135
        %s137 = smul.addr %s136, 8
        %s138 = scalar_lea.vmem %s0, %s137
      $region24: #{tpu_custom_call.1} parent=19 // pred_fallthru
        _
    $region20: #{tpu_custom_call.1} parent=5 // pred_fallthru
      _
    %p139 = scmp.le.s32.totalorder 1, %s8
    %p140 = scmp.lt.s32.totalorder %s8, 3
    %p141 = pnand %p139, %p140
    %p142 = pneg %p141
    // Predicated region
    $region25: #{tpu_custom_call.1} parent=5 // pred_check
      _
    $region26: #{tpu_custom_call.1} parent=5 // pred_check_branch
      %144 = sbr.rel (%p141) target = $region28
    $region27: #{tpu_custom_call.1} parent=5 // pred_region
      %s145 = ssub.s32 %s8, 1
      %p146 = scmp.lt.s32.totalorder %s17, 1
      %s147 = scalar_select %p146, %s17, 1
      %p148 = scmp.lt.s32.totalorder %s18, 0
      %s149 = scalar_select %p148, %s18, 0
      %s150 = smul.addr %s147, 32
      %s151 = sadd.s32 %s149, %s150
      %s152 = smul.addr %s151, 8
      %s153 = scalar_lea.vmem %s0, %s152
      %p154 = pneg %p48
      %p155 = pneg %p45
      %p156 = scmp.lt.s32.totalorder %s18, 0
      %s157 = scalar_select %p156, %s18, 0
      %s158 = smul.addr %s157, 8
      %s159 = scalar_lea.vmem %s1, %s158
      %p160 = pneg %p74
      %p161 = pneg %p71
      %p162 = pneg %p102
      %p163 = pneg %p99
      %p164 = scmp.lt.s32.totalorder %s17, 1
      %s165 = scalar_select %p164, %s17, 1
      %p166 = scmp.lt.s32.totalorder %s18, 0
      %s167 = scalar_select %p166, %s18, 0
      %s168 = smul.addr %s165, 32
      %s169 = sadd.s32 %s167, %s168
      %s170 = smul.addr %s169, 8
      %s171 = scalar_lea.vmem %s2, %s170
      %p172 = scmp.lt.s32.totalorder %s17, 1
      %s173 = scalar_select %p172, %s17, 1
      %p174 = scmp.lt.s32.totalorder %s18, 0
      %s175 = scalar_select %p174, %s18, 0
      %s176 = smul.addr %s173, 32
      %s177 = sadd.s32 %s175, %s176
      %s178 = smul.addr %s177, 8
      %s179 = scalar_lea.vmem %s0, %s178
      %p180 = scmp.lt.s32.totalorder %s18, 0
      %s181 = scalar_select %p180, %s18, 0
      %s182 = smul.addr %s181, 8
      %s183 = scalar_lea.vmem %s1, %s182
      %p184 = scmp.lt.s32.totalorder %s17, 1
      %s185 = scalar_select %p184, %s17, 1
      %p186 = scmp.lt.s32.totalorder %s18, 0
      %s187 = scalar_select %p186, %s18, 0
      %s188 = smul.addr %s185, 32
      %s189 = sadd.s32 %s187, %s188
      %s190 = smul.addr %s189, 8
      %s191 = scalar_lea.vmem %s2, %s190
      %vm192 = vcmask 31744
      %193 = vst.msk [vmem:[#allocation2] sm:$0xff] %vm192, 0.0
      %194 = vst.msk [vmem:[#allocation2 + $0x8] sm:$0xff] %vm192, 0.0
      %vm195 = vcmask 25600
      %196 = vst.msk [vmem:[#allocation2 + $0x10] sm:$0x3] %vm195, 0.0
      %s197 = scalar_lea.vmem [#allocation2], 408
      %198 = vst.msk [vmem:[%s197] sm:$0xff] %vm192, 0.0
      %199 = vst.msk [vmem:[%s197 + $0x8] sm:$0xff] %vm192, 0.0
      %200 = vst.msk [vmem:[%s197 + $0x10] sm:$0x3] %vm195, 0.0
      %s201 = scalar_lea.vmem [#allocation2], 24
      %vm202 = vcmask 24576
      %203 = vst.msk [vmem:[%s201] sm:$0x1] %vm202, 0.0
      %204 = vst.msk [vmem:[%s201 + $0x18] sm:$0x1] %vm202, 0.0
      %205 = vst.msk [vmem:[%s201 + $0x30] sm:$0x1] %vm202, 0.0
      %206 = vst.msk [vmem:[%s201 + $0x48] sm:$0x1] %vm202, 0.0
      %207 = vst.msk [vmem:[%s201 + $0x60] sm:$0x1] %vm202, 0.0
      %208 = vst.msk [vmem:[%s201 + $0x78] sm:$0x1] %vm202, 0.0
      %209 = vst.msk [vmem:[%s201 + $0x90] sm:$0x1] %vm202, 0.0
      %210 = vst.msk [vmem:[%s201 + $0xa8] sm:$0x1] %vm202, 0.0
      %211 = vst.msk [vmem:[%s201 + $0xc0] sm:$0x1] %vm202, 0.0
      %212 = vst.msk [vmem:[%s201 + $0xd8] sm:$0x1] %vm202, 0.0
      %213 = vst.msk [vmem:[%s201 + $0xf0] sm:$0x1] %vm202, 0.0
      %214 = vst.msk [vmem:[%s201 + $0x108] sm:$0x1] %vm202, 0.0
      %215 = vst.msk [vmem:[%s201 + $0x120] sm:$0x1] %vm202, 0.0
      %216 = vst.msk [vmem:[%s201 + $0x138] sm:$0x1] %vm202, 0.0
      %217 = vst.msk [vmem:[%s201 + $0x150] sm:$0x1] %vm202, 0.0
      %218 = vst.msk [vmem:[%s201 + $0x168] sm:$0x1] %vm202, 0.0
      %219 = vst.msk [vmem:[%s201 + $0x11] sm:$0x1] %vm202, 0.0
      %220 = vst.msk [vmem:[%s201 + $0x29] sm:$0x1] %vm202, 0.0
      %221 = vst.msk [vmem:[%s201 + $0x41] sm:$0x1] %vm202, 0.0
      %222 = vst.msk [vmem:[%s201 + $0x59] sm:$0x1] %vm202, 0.0
      %223 = vst.msk [vmem:[%s201 + $0x71] sm:$0x1] %vm202, 0.0
      %224 = vst.msk [vmem:[%s201 + $0x89] sm:$0x1] %vm202, 0.0
      %225 = vst.msk [vmem:[%s201 + $0xa1] sm:$0x1] %vm202, 0.0
      %226 = vst.msk [vmem:[%s201 + $0xb9] sm:$0x1] %vm202, 0.0
      %227 = vst.msk [vmem:[%s201 + $0xd1] sm:$0x1] %vm202, 0.0
      %228 = vst.msk [vmem:[%s201 + $0xe9] sm:$0x1] %vm202, 0.0
      %229 = vst.msk [vmem:[%s201 + $0x101] sm:$0x1] %vm202, 0.0
      %230 = vst.msk [vmem:[%s201 + $0x119] sm:$0x1] %vm202, 0.0
      %231 = vst.msk [vmem:[%s201 + $0x131] sm:$0x1] %vm202, 0.0
      %232 = vst.msk [vmem:[%s201 + $0x149] sm:$0x1] %vm202, 0.0
      %233 = vst.msk [vmem:[%s201 + $0x161] sm:$0x1] %vm202, 0.0
      %234 = vst.msk [vmem:[%s201 + $0x179] sm:$0x1] %vm202, 0.0
      %v235 = vld [vmem:[%s179] sm:$0xff]
      %v236 = vld [vmem:[%s179 + $0x8] sm:$0xff]
      %v237 = vld [vmem:[%s179 + $0x10] sm:$0xff]
      %v238 = vld [vmem:[%s179 + $0x18] sm:$0xff]
      %v239 = vld [vmem:[%s179 + $0x20] sm:$0xff]
      %v240 = vld [vmem:[%s179 + $0x28] sm:$0xff]
      %v241 = vld [vmem:[%s179 + $0x30] sm:$0xff]
      %v242 = vld [vmem:[%s179 + $0x38] sm:$0xff]
      %v243 = vld [vmem:[%s179 + $0x40] sm:$0xff]
      %v244 = vld [vmem:[%s179 + $0x48] sm:$0xff]
      %v245 = vld [vmem:[%s179 + $0x50] sm:$0xff]
      %v246 = vld [vmem:[%s179 + $0x58] sm:$0xff]
      %v247 = vld [vmem:[%s179 + $0x60] sm:$0xff]
      %v248 = vld [vmem:[%s179 + $0x68] sm:$0xff]
      %v249 = vld [vmem:[%s179 + $0x70] sm:$0xff]
      %v250 = vld [vmem:[%s179 + $0x78] sm:$0xff]
      %v251 = vld [vmem:[%s179 + $0x80] sm:$0xff]
      %v252 = vld [vmem:[%s179 + $0x88] sm:$0xff]
      %v253 = vld [vmem:[%s179 + $0x90] sm:$0xff]
      %v254 = vld [vmem:[%s179 + $0x98] sm:$0xff]
      %v255 = vld [vmem:[%s179 + $0xa0] sm:$0xff]
      %v256 = vld [vmem:[%s179 + $0xa8] sm:$0xff]
      %v257 = vld [vmem:[%s179 + $0xb0] sm:$0xff]
      %v258 = vld [vmem:[%s179 + $0xb8] sm:$0xff]
      %v259 = vld [vmem:[%s179 + $0xc0] sm:$0xff]
      %v260 = vld [vmem:[%s179 + $0xc8] sm:$0xff]
      %v261 = vld [vmem:[%s179 + $0xd0] sm:$0xff]
      %v262 = vld [vmem:[%s179 + $0xd8] sm:$0xff]
      %v263 = vld [vmem:[%s179 + $0xe0] sm:$0xff]
      %v264 = vld [vmem:[%s179 + $0xe8] sm:$0xff]
      %v265 = vld [vmem:[%s179 + $0xf0] sm:$0xff]
      %v266 = vld [vmem:[%s179 + $0xf8] sm:$0xff]
      %267 = vst.msk [vmem:[%s201 + $0x1] sm:$0xff] %vm192, %v235
      %268 = vst.msk [vmem:[%s201 + $0x9] sm:$0xff] %vm192, %v236
      %269 = vst.msk [vmem:[%s201 + $0x19] sm:$0xff] %vm192, %v237
      %270 = vst.msk [vmem:[%s201 + $0x21] sm:$0xff] %vm192, %v238
      %271 = vst.msk [vmem:[%s201 + $0x31] sm:$0xff] %vm192, %v239
      %272 = vst.msk [vmem:[%s201 + $0x39] sm:$0xff] %vm192, %v240
      %273 = vst.msk [vmem:[%s201 + $0x49] sm:$0xff] %vm192, %v241
      %274 = vst.msk [vmem:[%s201 + $0x51] sm:$0xff] %vm192, %v242
      %275 = vst.msk [vmem:[%s201 + $0x61] sm:$0xff] %vm192, %v243
      %276 = vst.msk [vmem:[%s201 + $0x69] sm:$0xff] %vm192, %v244
      %277 = vst.msk [vmem:[%s201 + $0x79] sm:$0xff] %vm192, %v245
      %278 = vst.msk [vmem:[%s201 + $0x81] sm:$0xff] %vm192, %v246
      %279 = vst.msk [vmem:[%s201 + $0x91] sm:$0xff] %vm192, %v247
      %280 = vst.msk [vmem:[%s201 + $0x99] sm:$0xff] %vm192, %v248
      %281 = vst.msk [vmem:[%s201 + $0xa9] sm:$0xff] %vm192, %v249
      %282 = vst.msk [vmem:[%s201 + $0xb1] sm:$0xff] %vm192, %v250
      %283 = vst.msk [vmem:[%s201 + $0xc1] sm:$0xff] %vm192, %v251
      %284 = vst.msk [vmem:[%s201 + $0xc9] sm:$0xff] %vm192, %v252
      %285 = vst.msk [vmem:[%s201 + $0xd9] sm:$0xff] %vm192, %v253
      %286 = vst.msk [vmem:[%s201 + $0xe1] sm:$0xff] %vm192, %v254
      %287 = vst.msk [vmem:[%s201 + $0xf1] sm:$0xff] %vm192, %v255
      %288 = vst.msk [vmem:[%s201 + $0xf9] sm:$0xff] %vm192, %v256
      %289 = vst.msk [vmem:[%s201 + $0x109] sm:$0xff] %vm192, %v257
      %290 = vst.msk [vmem:[%s201 + $0x111] sm:$0xff] %vm192, %v258
      %291 = vst.msk [vmem:[%s201 + $0x121] sm:$0xff] %vm192, %v259
      %292 = vst.msk [vmem:[%s201 + $0x129] sm:$0xff] %vm192, %v260
      %293 = vst.msk [vmem:[%s201 + $0x139] sm:$0xff] %vm192, %v261
      %294 = vst.msk [vmem:[%s201 + $0x141] sm:$0xff] %vm192, %v262
      %295 = vst.msk [vmem:[%s201 + $0x151] sm:$0xff] %vm192, %v263
      %296 = vst.msk [vmem:[%s201 + $0x159] sm:$0xff] %vm192, %v264
      %297 = vst.msk [vmem:[%s201 + $0x169] sm:$0xff] %vm192, %v265
      %298 = vst.msk [vmem:[%s201 + $0x171] sm:$0xff] %vm192, %v266
      %v299 = vld [vmem:[#allocation2] sm:$0xff]
      %v300 = vld [vmem:[#allocation2 + $0x8] sm:$0xff]
      %v301 = vld [vmem:[#allocation2 + $0x18] sm:$0xff]
      %v302 = vld [vmem:[#allocation2 + $0x20] sm:$0xff]
      %v303 = vld [vmem:[#allocation2 + $0x30] sm:$0xff]
      %v304 = vld [vmem:[#allocation2 + $0x38] sm:$0xff]
      %v305 = vld [vmem:[#allocation2 + $0x48] sm:$0xff]
      %v306 = vld [vmem:[#allocation2 + $0x50] sm:$0xff]
      %v307 = vld [vmem:[#allocation2 + $0x60] sm:$0xff]
      %v308 = vld [vmem:[#allocation2 + $0x68] sm:$0xff]
      %v309 = vld [vmem:[#allocation2 + $0x78] sm:$0xff]
      %v310 = vld [vmem:[#allocation2 + $0x80] sm:$0xff]
      %v311 = vld [vmem:[#allocation2 + $0x90] sm:$0xff]
      %v312 = vld [vmem:[#allocation2 + $0x98] sm:$0xff]
      %v313 = vld [vmem:[#allocation2 + $0xa8] sm:$0xff]
      %v314 = vld [vmem:[#allocation2 + $0xb0] sm:$0xff]
      %v315 = vld [vmem:[#allocation2 + $0xc0] sm:$0xff]
      %v316 = vld [vmem:[#allocation2 + $0xc8] sm:$0xff]
      %v317 = vld [vmem:[#allocation2 + $0xd8] sm:$0xff]
      %v318 = vld [vmem:[#allocation2 + $0xe0] sm:$0xff]
      %v319 = vld [vmem:[#allocation2 + $0xf0] sm:$0xff]
      %v320 = vld [vmem:[#allocation2 + $0xf8] sm:$0xff]
      %v321 = vld [vmem:[#allocation2 + $0x108] sm:$0xff]
      %v322 = vld [vmem:[#allocation2 + $0x110] sm:$0xff]
      %v323 = vld [vmem:[#allocation2 + $0x120] sm:$0xff]
      %v324 = vld [vmem:[#allocation2 + $0x128] sm:$0xff]
      %v325 = vld [vmem:[#allocation2 + $0x138] sm:$0xff]
      %v326 = vld [vmem:[#allocation2 + $0x140] sm:$0xff]
      %v327 = vld [vmem:[#allocation2 + $0x150] sm:$0xff]
      %v328 = vld [vmem:[#allocation2 + $0x158] sm:$0xff]
      %v329 = vld [vmem:[#allocation2 + $0x168] sm:$0xff]
      %v330 = vld [vmem:[#allocation2 + $0x170] sm:$0xff]
      %v331 = vld [vmem:[%s183] sm:$0x1]
      %v332 = vlaneseq
      %v333 = vshrl.u32 %v332, 7
      %v334 = vsub.s32 0, %v333
      %v335 = vrot.slane %v331, %v334
      %v336 = vmul.f32 %v299, %v335
      %v337 = vmul.f32 %v300, %v335
      %v338 = vmul.f32 %v301, %v335
      %v339 = vmul.f32 %v302, %v335
      %v340 = vmul.f32 %v303, %v335
      %v341 = vmul.f32 %v304, %v335
      %v342 = vmul.f32 %v305, %v335
      %v343 = vmul.f32 %v306, %v335
      %v344 = vmul.f32 %v307, %v335
      %v345 = vmul.f32 %v308, %v335
      %v346 = vmul.f32 %v309, %v335
      %v347 = vmul.f32 %v310, %v335
      %v348 = vmul.f32 %v311, %v335
      %v349 = vmul.f32 %v312, %v335
      %v350 = vmul.f32 %v313, %v335
      %v351 = vmul.f32 %v314, %v335
      %v352 = vmul.f32 %v315, %v335
      %v353 = vmul.f32 %v316, %v335
      %v354 = vmul.f32 %v317, %v335
      %v355 = vmul.f32 %v318, %v335
      %v356 = vmul.f32 %v319, %v335
      %v357 = vmul.f32 %v320, %v335
      %v358 = vmul.f32 %v321, %v335
      %v359 = vmul.f32 %v322, %v335
      %v360 = vmul.f32 %v323, %v335
      %v361 = vmul.f32 %v324, %v335
      %v362 = vmul.f32 %v325, %v335
      %v363 = vmul.f32 %v326, %v335
      %v364 = vmul.f32 %v327, %v335
      %v365 = vmul.f32 %v328, %v335
      %v366 = vmul.f32 %v329, %v335
      %v367 = vmul.f32 %v330, %v335
      %v368 = vadd.f32 %v336, 0.0
      %v369 = vadd.f32 %v337, 0.0
      %v370 = vadd.f32 %v338, 0.0
      %v371 = vadd.f32 %v339, 0.0
      %v372 = vadd.f32 %v340, 0.0
      %v373 = vadd.f32 %v341, 0.0
      %v374 = vadd.f32 %v342, 0.0
      %v375 = vadd.f32 %v343, 0.0
      %v376 = vadd.f32 %v344, 0.0
      %v377 = vadd.f32 %v345, 0.0
      %v378 = vadd.f32 %v346, 0.0
      %v379 = vadd.f32 %v347, 0.0
      %v380 = vadd.f32 %v348, 0.0
      %v381 = vadd.f32 %v349, 0.0
      %v382 = vadd.f32 %v350, 0.0
      %v383 = vadd.f32 %v351, 0.0
      %v384 = vadd.f32 %v352, 0.0
      %v385 = vadd.f32 %v353, 0.0
      %v386 = vadd.f32 %v354, 0.0
      %v387 = vadd.f32 %v355, 0.0
      %v388 = vadd.f32 %v356, 0.0
      %v389 = vadd.f32 %v357, 0.0
      %v390 = vadd.f32 %v358, 0.0
      %v391 = vadd.f32 %v359, 0.0
      %v392 = vadd.f32 %v360, 0.0
      %v393 = vadd.f32 %v361, 0.0
      %v394 = vadd.f32 %v362, 0.0
      %v395 = vadd.f32 %v363, 0.0
      %v396 = vadd.f32 %v364, 0.0
      %v397 = vadd.f32 %v365, 0.0
      %v398 = vadd.f32 %v366, 0.0
      %v399 = vadd.f32 %v367, 0.0
      %v400 = vld [vmem:[#allocation2 + $0x1] sm:$0xff]
      %v401 = vld [vmem:[#allocation2 + $0x9] sm:$0xff]
      %v402 = vld [vmem:[#allocation2 + $0x19] sm:$0xff]
      %v403 = vld [vmem:[#allocation2 + $0x21] sm:$0xff]
      %v404 = vld [vmem:[#allocation2 + $0x31] sm:$0xff]
      %v405 = vld [vmem:[#allocation2 + $0x39] sm:$0xff]
      %v406 = vld [vmem:[#allocation2 + $0x49] sm:$0xff]
      %v407 = vld [vmem:[#allocation2 + $0x51] sm:$0xff]
      %v408 = vld [vmem:[#allocation2 + $0x61] sm:$0xff]
      %v409 = vld [vmem:[#allocation2 + $0x69] sm:$0xff]
      %v410 = vld [vmem:[#allocation2 + $0x79] sm:$0xff]
      %v411 = vld [vmem:[#allocation2 + $0x81] sm:$0xff]
      %v412 = vld [vmem:[#allocation2 + $0x91] sm:$0xff]
      %v413 = vld [vmem:[#allocation2 + $0x99] sm:$0xff]
      %v414 = vld [vmem:[#allocation2 + $0xa9] sm:$0xff]
      %v415 = vld [vmem:[#allocation2 + $0xb1] sm:$0xff]
      %v416 = vld [vmem:[#allocation2 + $0xc1] sm:$0xff]
      %v417 = vld [vmem:[#allocation2 + $0xc9] sm:$0xff]
      %v418 = vld [vmem:[#allocation2 + $0xd9] sm:$0xff]
      %v419 = vld [vmem:[#allocation2 + $0xe1] sm:$0xff]
      %v420 = vld [vmem:[#allocation2 + $0xf1] sm:$0xff]
      %v421 = vld [vmem:[#allocation2 + $0xf9] sm:$0xff]
      %v422 = vld [vmem:[#allocation2 + $0x109] sm:$0xff]
      %v423 = vld [vmem:[#allocation2 + $0x111] sm:$0xff]
      %v424 = vld [vmem:[#allocation2 + $0x121] sm:$0xff]
      %v425 = vld [vmem:[#allocation2 + $0x129] sm:$0xff]
      %v426 = vld [vmem:[#allocation2 + $0x139] sm:$0xff]
      %v427 = vld [vmem:[#allocation2 + $0x141] sm:$0xff]
      %v428 = vld [vmem:[#allocation2 + $0x151] sm:$0xff]
      %v429 = vld [vmem:[#allocation2 + $0x159] sm:$0xff]
      %v430 = vld [vmem:[#allocation2 + $0x169] sm:$0xff]
      %v431 = vld [vmem:[#allocation2 + $0x171] sm:$0xff]
      %v432 = vld [vmem:[%s183 + $0x1] sm:$0x1]
      %v433 = vlaneseq
      %v434 = vshrl.u32 %v433, 7
      %v435 = vsub.s32 0, %v434
      %v436 = vrot.slane %v432, %v435
      %v437 = vmul.f32 %v400, %v436
      %v438 = vmul.f32 %v401, %v436
      %v439 = vmul.f32 %v402, %v436
      %v440 = vmul.f32 %v403, %v436
      %v441 = vmul.f32 %v404, %v436
      %v442 = vmul.f32 %v405, %v436
      %v443 = vmul.f32 %v406, %v436
      %v444 = vmul.f32 %v407, %v436
      %v445 = vmul.f32 %v408, %v436
      %v446 = vmul.f32 %v409, %v436
      %v447 = vmul.f32 %v410, %v436
      %v448 = vmul.f32 %v411, %v436
      %v449 = vmul.f32 %v412, %v436
      %v450 = vmul.f32 %v413, %v436
      %v451 = vmul.f32 %v414, %v436
      %v452 = vmul.f32 %v415, %v436
      %v453 = vmul.f32 %v416, %v436
      %v454 = vmul.f32 %v417, %v436
      %v455 = vmul.f32 %v418, %v436
      %v456 = vmul.f32 %v419, %v436
      %v457 = vmul.f32 %v420, %v436
      %v458 = vmul.f32 %v421, %v436
      %v459 = vmul.f32 %v422, %v436
      %v460 = vmul.f32 %v423, %v436
      %v461 = vmul.f32 %v424, %v436
      %v462 = vmul.f32 %v425, %v436
      %v463 = vmul.f32 %v426, %v436
      %v464 = vmul.f32 %v427, %v436
      %v465 = vmul.f32 %v428, %v436
      %v466 = vmul.f32 %v429, %v436
      %v467 = vmul.f32 %v430, %v436
      %v468 = vmul.f32 %v431, %v436
      %v469 = vadd.f32 %v368, %v437
      %v470 = vadd.f32 %v369, %v438
      %v471 = vadd.f32 %v370, %v439
      %v472 = vadd.f32 %v371, %v440
      %v473 = vadd.f32 %v372, %v441
      %v474 = vadd.f32 %v373, %v442
      %v475 = vadd.f32 %v374, %v443
      %v476 = vadd.f32 %v375, %v444
      %v477 = vadd.f32 %v376, %v445
      %v478 = vadd.f32 %v377, %v446
      %v479 = vadd.f32 %v378, %v447
      %v480 = vadd.f32 %v379, %v448
      %v481 = vadd.f32 %v380, %v449
      %v482 = vadd.f32 %v381, %v450
      %v483 = vadd.f32 %v382, %v451
      %v484 = vadd.f32 %v383, %v452
      %v485 = vadd.f32 %v384, %v453
      %v486 = vadd.f32 %v385, %v454
      %v487 = vadd.f32 %v386, %v455
      %v488 = vadd.f32 %v387, %v456
      %v489 = vadd.f32 %v388, %v457
      %v490 = vadd.f32 %v389, %v458
      %v491 = vadd.f32 %v390, %v459
      %v492 = vadd.f32 %v391, %v460
      %v493 = vadd.f32 %v392, %v461
      %v494 = vadd.f32 %v393, %v462
      %v495 = vadd.f32 %v394, %v463
      %v496 = vadd.f32 %v395, %v464
      %v497 = vadd.f32 %v396, %v465
      %v498 = vadd.f32 %v397, %v466
      %v499 = vadd.f32 %v398, %v467
      %v500 = vadd.f32 %v399, %v468
      %v501 = vld [vmem:[#allocation2 + $0x2] sm:$0xff]
      %v502 = vld [vmem:[#allocation2 + $0xa] sm:$0xff]
      %v503 = vld [vmem:[#allocation2 + $0x1a] sm:$0xff]
      %v504 = vld [vmem:[#allocation2 + $0x22] sm:$0xff]
      %v505 = vld [vmem:[#allocation2 + $0x32] sm:$0xff]
      %v506 = vld [vmem:[#allocation2 + $0x3a] sm:$0xff]
      %v507 = vld [vmem:[#allocation2 + $0x4a] sm:$0xff]
      %v508 = vld [vmem:[#allocation2 + $0x52] sm:$0xff]
      %v509 = vld [vmem:[#allocation2 + $0x62] sm:$0xff]
      %v510 = vld [vmem:[#allocation2 + $0x6a] sm:$0xff]
      %v511 = vld [vmem:[#allocation2 + $0x7a] sm:$0xff]
      %v512 = vld [vmem:[#allocation2 + $0x82] sm:$0xff]
      %v513 = vld [vmem:[#allocation2 + $0x92] sm:$0xff]
      %v514 = vld [vmem:[#allocation2 + $0x9a] sm:$0xff]
      %v515 = vld [vmem:[#allocation2 + $0xaa] sm:$0xff]
      %v516 = vld [vmem:[#allocation2 + $0xb2] sm:$0xff]
      %v517 = vld [vmem:[#allocation2 + $0xc2] sm:$0xff]
      %v518 = vld [vmem:[#allocation2 + $0xca] sm:$0xff]
      %v519 = vld [vmem:[#allocation2 + $0xda] sm:$0xff]
      %v520 = vld [vmem:[#allocation2 + $0xe2] sm:$0xff]
      %v521 = vld [vmem:[#allocation2 + $0xf2] sm:$0xff]
      %v522 = vld [vmem:[#allocation2 + $0xfa] sm:$0xff]
      %v523 = vld [vmem:[#allocation2 + $0x10a] sm:$0xff]
      %v524 = vld [vmem:[#allocation2 + $0x112] sm:$0xff]
      %v525 = vld [vmem:[#allocation2 + $0x122] sm:$0xff]
      %v526 = vld [vmem:[#allocation2 + $0x12a] sm:$0xff]
      %v527 = vld [vmem:[#allocation2 + $0x13a] sm:$0xff]
      %v528 = vld [vmem:[#allocation2 + $0x142] sm:$0xff]
      %v529 = vld [vmem:[#allocation2 + $0x152] sm:$0xff]
      %v530 = vld [vmem:[#allocation2 + $0x15a] sm:$0xff]
      %v531 = vld [vmem:[#allocation2 + $0x16a] sm:$0xff]
      %v532 = vld [vmem:[#allocation2 + $0x172] sm:$0xff]
      %v533 = vld [vmem:[%s183 + $0x2] sm:$0x1]
      %v534 = vlaneseq
      %v535 = vshrl.u32 %v534, 7
      %v536 = vsub.s32 0, %v535
      %v537 = vrot.slane %v533, %v536
      %v538 = vmul.f32 %v501, %v537
      %v539 = vmul.f32 %v502, %v537
      %v540 = vmul.f32 %v503, %v537
      %v541 = vmul.f32 %v504, %v537
      %v542 = vmul.f32 %v505, %v537
      %v543 = vmul.f32 %v506, %v537
      %v544 = vmul.f32 %v507, %v537
      %v545 = vmul.f32 %v508, %v537
      %v546 = vmul.f32 %v509, %v537
      %v547 = vmul.f32 %v510, %v537
      %v548 = vmul.f32 %v511, %v537
      %v549 = vmul.f32 %v512, %v537
      %v550 = vmul.f32 %v513, %v537
      %v551 = vmul.f32 %v514, %v537
      %v552 = vmul.f32 %v515, %v537
      %v553 = vmul.f32 %v516, %v537
      %v554 = vmul.f32 %v517, %v537
      %v555 = vmul.f32 %v518, %v537
      %v556 = vmul.f32 %v519, %v537
      %v557 = vmul.f32 %v520, %v537
      %v558 = vmul.f32 %v521, %v537
      %v559 = vmul.f32 %v522, %v537
      %v560 = vmul.f32 %v523, %v537
      %v561 = vmul.f32 %v524, %v537
      %v562 = vmul.f32 %v525, %v537
      %v563 = vmul.f32 %v526, %v537
      %v564 = vmul.f32 %v527, %v537
      %v565 = vmul.f32 %v528, %v537
      %v566 = vmul.f32 %v529, %v537
      %v567 = vmul.f32 %v530, %v537
      %v568 = vmul.f32 %v531, %v537
      %v569 = vmul.f32 %v532, %v537
      %v570 = vadd.f32 %v469, %v538
      %v571 = vadd.f32 %v470, %v539
      %v572 = vadd.f32 %v471, %v540
      %v573 = vadd.f32 %v472, %v541
      %v574 = vadd.f32 %v473, %v542
      %v575 = vadd.f32 %v474, %v543
      %v576 = vadd.f32 %v475, %v544
      %v577 = vadd.f32 %v476, %v545
      %v578 = vadd.f32 %v477, %v546
      %v579 = vadd.f32 %v478, %v547
      %v580 = vadd.f32 %v479, %v548
      %v581 = vadd.f32 %v480, %v549
      %v582 = vadd.f32 %v481, %v550
      %v583 = vadd.f32 %v482, %v551
      %v584 = vadd.f32 %v483, %v552
      %v585 = vadd.f32 %v484, %v553
      %v586 = vadd.f32 %v485, %v554
      %v587 = vadd.f32 %v486, %v555
      %v588 = vadd.f32 %v487, %v556
      %v589 = vadd.f32 %v488, %v557
      %v590 = vadd.f32 %v489, %v558
      %v591 = vadd.f32 %v490, %v559
      %v592 = vadd.f32 %v491, %v560
      %v593 = vadd.f32 %v492, %v561
      %v594 = vadd.f32 %v493, %v562
      %v595 = vadd.f32 %v494, %v563
      %v596 = vadd.f32 %v495, %v564
      %v597 = vadd.f32 %v496, %v565
      %v598 = vadd.f32 %v497, %v566
      %v599 = vadd.f32 %v498, %v567
      %v600 = vadd.f32 %v499, %v568
      %v601 = vadd.f32 %v500, %v569
      %v602 = vld [vmem:[%s201] sm:$0xff]
      %v603 = vld [vmem:[%s201 + $0x8] sm:$0xff]
      %v604 = vld [vmem:[%s201 + $0x18] sm:$0xff]
      %v605 = vld [vmem:[%s201 + $0x20] sm:$0xff]
      %v606 = vld [vmem:[%s201 + $0x30] sm:$0xff]
      %v607 = vld [vmem:[%s201 + $0x38] sm:$0xff]
      %v608 = vld [vmem:[%s201 + $0x48] sm:$0xff]
      %v609 = vld [vmem:[%s201 + $0x50] sm:$0xff]
      %v610 = vld [vmem:[%s201 + $0x60] sm:$0xff]
      %v611 = vld [vmem:[%s201 + $0x68] sm:$0xff]
      %v612 = vld [vmem:[%s201 + $0x78] sm:$0xff]
      %v613 = vld [vmem:[%s201 + $0x80] sm:$0xff]
      %v614 = vld [vmem:[%s201 + $0x90] sm:$0xff]
      %v615 = vld [vmem:[%s201 + $0x98] sm:$0xff]
      %v616 = vld [vmem:[%s201 + $0xa8] sm:$0xff]
      %v617 = vld [vmem:[%s201 + $0xb0] sm:$0xff]
      %v618 = vld [vmem:[%s201 + $0xc0] sm:$0xff]
      %v619 = vld [vmem:[%s201 + $0xc8] sm:$0xff]
      %v620 = vld [vmem:[%s201 + $0xd8] sm:$0xff]
      %v621 = vld [vmem:[%s201 + $0xe0] sm:$0xff]
      %v622 = vld [vmem:[%s201 + $0xf0] sm:$0xff]
      %v623 = vld [vmem:[%s201 + $0xf8] sm:$0xff]
      %v624 = vld [vmem:[%s201 + $0x108] sm:$0xff]
      %v625 = vld [vmem:[%s201 + $0x110] sm:$0xff]
      %v626 = vld [vmem:[%s201 + $0x120] sm:$0xff]
      %v627 = vld [vmem:[%s201 + $0x128] sm:$0xff]
      %v628 = vld [vmem:[%s201 + $0x138] sm:$0xff]
      %v629 = vld [vmem:[%s201 + $0x140] sm:$0xff]
      %v630 = vld [vmem:[%s201 + $0x150] sm:$0xff]
      %v631 = vld [vmem:[%s201 + $0x158] sm:$0xff]
      %v632 = vld [vmem:[%s201 + $0x168] sm:$0xff]
      %v633 = vld [vmem:[%s201 + $0x170] sm:$0xff]
      %v634 = vld [vmem:[%s183 + $0x3] sm:$0x1]
      %v635 = vlaneseq
      %v636 = vshrl.u32 %v635, 7
      %v637 = vsub.s32 0, %v636
      %v638 = vrot.slane %v634, %v637
      %v639 = vmul.f32 %v602, %v638
      %v640 = vmul.f32 %v603, %v638
      %v641 = vmul.f32 %v604, %v638
      %v642 = vmul.f32 %v605, %v638
      %v643 = vmul.f32 %v606, %v638
      %v644 = vmul.f32 %v607, %v638
      %v645 = vmul.f32 %v608, %v638
      %v646 = vmul.f32 %v609, %v638
      %v647 = vmul.f32 %v610, %v638
      %v648 = vmul.f32 %v611, %v638
      %v649 = vmul.f32 %v612, %v638
      %v650 = vmul.f32 %v613, %v638
      %v651 = vmul.f32 %v614, %v638
      %v652 = vmul.f32 %v615, %v638
      %v653 = vmul.f32 %v616, %v638
      %v654 = vmul.f32 %v617, %v638
      %v655 = vmul.f32 %v618, %v638
      %v656 = vmul.f32 %v619, %v638
      %v657 = vmul.f32 %v620, %v638
      %v658 = vmul.f32 %v621, %v638
      %v659 = vmul.f32 %v622, %v638
      %v660 = vmul.f32 %v623, %v638
      %v661 = vmul.f32 %v624, %v638
      %v662 = vmul.f32 %v625, %v638
      %v663 = vmul.f32 %v626, %v638
      %v664 = vmul.f32 %v627, %v638
      %v665 = vmul.f32 %v628, %v638
      %v666 = vmul.f32 %v629, %v638
      %v667 = vmul.f32 %v630, %v638
      %v668 = vmul.f32 %v631, %v638
      %v669 = vmul.f32 %v632, %v638
      %v670 = vmul.f32 %v633, %v638
      %v671 = vadd.f32 %v570, %v639
      %v672 = vadd.f32 %v571, %v640
      %v673 = vadd.f32 %v572, %v641
      %v674 = vadd.f32 %v573, %v642
      %v675 = vadd.f32 %v574, %v643
      %v676 = vadd.f32 %v575, %v644
      %v677 = vadd.f32 %v576, %v645
      %v678 = vadd.f32 %v577, %v646
      %v679 = vadd.f32 %v578, %v647
      %v680 = vadd.f32 %v579, %v648
      %v681 = vadd.f32 %v580, %v649
      %v682 = vadd.f32 %v581, %v650
      %v683 = vadd.f32 %v582, %v651
      %v684 = vadd.f32 %v583, %v652
      %v685 = vadd.f32 %v584, %v653
      %v686 = vadd.f32 %v585, %v654
      %v687 = vadd.f32 %v586, %v655
      %v688 = vadd.f32 %v587, %v656
      %v689 = vadd.f32 %v588, %v657
      %v690 = vadd.f32 %v589, %v658
      %v691 = vadd.f32 %v590, %v659
      %v692 = vadd.f32 %v591, %v660
      %v693 = vadd.f32 %v592, %v661
      %v694 = vadd.f32 %v593, %v662
      %v695 = vadd.f32 %v594, %v663
      %v696 = vadd.f32 %v595, %v664
      %v697 = vadd.f32 %v596, %v665
      %v698 = vadd.f32 %v597, %v666
      %v699 = vadd.f32 %v598, %v667
      %v700 = vadd.f32 %v599, %v668
      %v701 = vadd.f32 %v600, %v669
      %v702 = vadd.f32 %v601, %v670
      %v703 = vld [vmem:[%s201 + $0x1] sm:$0xff]
      %v704 = vld [vmem:[%s201 + $0x9] sm:$0xff]
      %v705 = vld [vmem:[%s201 + $0x19] sm:$0xff]
      %v706 = vld [vmem:[%s201 + $0x21] sm:$0xff]
      %v707 = vld [vmem:[%s201 + $0x31] sm:$0xff]
      %v708 = vld [vmem:[%s201 + $0x39] sm:$0xff]
      %v709 = vld [vmem:[%s201 + $0x49] sm:$0xff]
      %v710 = vld [vmem:[%s201 + $0x51] sm:$0xff]
      %v711 = vld [vmem:[%s201 + $0x61] sm:$0xff]
      %v712 = vld [vmem:[%s201 + $0x69] sm:$0xff]
      %v713 = vld [vmem:[%s201 + $0x79] sm:$0xff]
      %v714 = vld [vmem:[%s201 + $0x81] sm:$0xff]
      %v715 = vld [vmem:[%s201 + $0x91] sm:$0xff]
      %v716 = vld [vmem:[%s201 + $0x99] sm:$0xff]
      %v717 = vld [vmem:[%s201 + $0xa9] sm:$0xff]
      %v718 = vld [vmem:[%s201 + $0xb1] sm:$0xff]
      %v719 = vld [vmem:[%s201 + $0xc1] sm:$0xff]
      %v720 = vld [vmem:[%s201 + $0xc9] sm:$0xff]
      %v721 = vld [vmem:[%s201 + $0xd9] sm:$0xff]
      %v722 = vld [vmem:[%s201 + $0xe1] sm:$0xff]
      %v723 = vld [vmem:[%s201 + $0xf1] sm:$0xff]
      %v724 = vld [vmem:[%s201 + $0xf9] sm:$0xff]
      %v725 = vld [vmem:[%s201 + $0x109] sm:$0xff]
      %v726 = vld [vmem:[%s201 + $0x111] sm:$0xff]
      %v727 = vld [vmem:[%s201 + $0x121] sm:$0xff]
      %v728 = vld [vmem:[%s201 + $0x129] sm:$0xff]
      %v729 = vld [vmem:[%s201 + $0x139] sm:$0xff]
      %v730 = vld [vmem:[%s201 + $0x141] sm:$0xff]
      %v731 = vld [vmem:[%s201 + $0x151] sm:$0xff]
      %v732 = vld [vmem:[%s201 + $0x159] sm:$0xff]
      %v733 = vld [vmem:[%s201 + $0x169] sm:$0xff]
      %v734 = vld [vmem:[%s201 + $0x171] sm:$0xff]
      %v735 = vld [vmem:[%s183 + $0x4] sm:$0x1]
      %v736 = vlaneseq
      %v737 = vshrl.u32 %v736, 7
      %v738 = vsub.s32 0, %v737
      %v739 = vrot.slane %v735, %v738
      %v740 = vmul.f32 %v703, %v739
      %v741 = vmul.f32 %v704, %v739
      %v742 = vmul.f32 %v705, %v739
      %v743 = vmul.f32 %v706, %v739
      %v744 = vmul.f32 %v707, %v739
      %v745 = vmul.f32 %v708, %v739
      %v746 = vmul.f32 %v709, %v739
      %v747 = vmul.f32 %v710, %v739
      %v748 = vmul.f32 %v711, %v739
      %v749 = vmul.f32 %v712, %v739
      %v750 = vmul.f32 %v713, %v739
      %v751 = vmul.f32 %v714, %v739
      %v752 = vmul.f32 %v715, %v739
      %v753 = vmul.f32 %v716, %v739
      %v754 = vmul.f32 %v717, %v739
      %v755 = vmul.f32 %v718, %v739
      %v756 = vmul.f32 %v719, %v739
      %v757 = vmul.f32 %v720, %v739
      %v758 = vmul.f32 %v721, %v739
      %v759 = vmul.f32 %v722, %v739
      %v760 = vmul.f32 %v723, %v739
      %v761 = vmul.f32 %v724, %v739
      %v762 = vmul.f32 %v725, %v739
      %v763 = vmul.f32 %v726, %v739
      %v764 = vmul.f32 %v727, %v739
      %v765 = vmul.f32 %v728, %v739
      %v766 = vmul.f32 %v729, %v739
      %v767 = vmul.f32 %v730, %v739
      %v768 = vmul.f32 %v731, %v739
      %v769 = vmul.f32 %v732, %v739
      %v770 = vmul.f32 %v733, %v739
      %v771 = vmul.f32 %v734, %v739
      %v772 = vadd.f32 %v671, %v740
      %v773 = vadd.f32 %v672, %v741
      %v774 = vadd.f32 %v673, %v742
      %v775 = vadd.f32 %v674, %v743
      %v776 = vadd.f32 %v675, %v744
      %v777 = vadd.f32 %v676, %v745
      %v778 = vadd.f32 %v677, %v746
      %v779 = vadd.f32 %v678, %v747
      %v780 = vadd.f32 %v679, %v748
      %v781 = vadd.f32 %v680, %v749
      %v782 = vadd.f32 %v681, %v750
      %v783 = vadd.f32 %v682, %v751
      %v784 = vadd.f32 %v683, %v752
      %v785 = vadd.f32 %v684, %v753
      %v786 = vadd.f32 %v685, %v754
      %v787 = vadd.f32 %v686, %v755
      %v788 = vadd.f32 %v687, %v756
      %v789 = vadd.f32 %v688, %v757
      %v790 = vadd.f32 %v689, %v758
      %v791 = vadd.f32 %v690, %v759
      %v792 = vadd.f32 %v691, %v760
      %v793 = vadd.f32 %v692, %v761
      %v794 = vadd.f32 %v693, %v762
      %v795 = vadd.f32 %v694, %v763
      %v796 = vadd.f32 %v695, %v764
      %v797 = vadd.f32 %v696, %v765
      %v798 = vadd.f32 %v697, %v766
      %v799 = vadd.f32 %v698, %v767
      %v800 = vadd.f32 %v699, %v768
      %v801 = vadd.f32 %v700, %v769
      %v802 = vadd.f32 %v701, %v770
      %v803 = vadd.f32 %v702, %v771
      %v804 = vld [vmem:[%s201 + $0x2] sm:$0xff]
      %v805 = vld [vmem:[%s201 + $0xa] sm:$0xff]
      %v806 = vld [vmem:[%s201 + $0x1a] sm:$0xff]
      %v807 = vld [vmem:[%s201 + $0x22] sm:$0xff]
      %v808 = vld [vmem:[%s201 + $0x32] sm:$0xff]
      %v809 = vld [vmem:[%s201 + $0x3a] sm:$0xff]
      %v810 = vld [vmem:[%s201 + $0x4a] sm:$0xff]
      %v811 = vld [vmem:[%s201 + $0x52] sm:$0xff]
      %v812 = vld [vmem:[%s201 + $0x62] sm:$0xff]
      %v813 = vld [vmem:[%s201 + $0x6a] sm:$0xff]
      %v814 = vld [vmem:[%s201 + $0x7a] sm:$0xff]
      %v815 = vld [vmem:[%s201 + $0x82] sm:$0xff]
      %v816 = vld [vmem:[%s201 + $0x92] sm:$0xff]
      %v817 = vld [vmem:[%s201 + $0x9a] sm:$0xff]
      %v818 = vld [vmem:[%s201 + $0xaa] sm:$0xff]
      %v819 = vld [vmem:[%s201 + $0xb2] sm:$0xff]
      %v820 = vld [vmem:[%s201 + $0xc2] sm:$0xff]
      %v821 = vld [vmem:[%s201 + $0xca] sm:$0xff]
      %v822 = vld [vmem:[%s201 + $0xda] sm:$0xff]
      %v823 = vld [vmem:[%s201 + $0xe2] sm:$0xff]
      %v824 = vld [vmem:[%s201 + $0xf2] sm:$0xff]
      %v825 = vld [vmem:[%s201 + $0xfa] sm:$0xff]
      %v826 = vld [vmem:[%s201 + $0x10a] sm:$0xff]
      %v827 = vld [vmem:[%s201 + $0x112] sm:$0xff]
      %v828 = vld [vmem:[%s201 + $0x122] sm:$0xff]
      %v829 = vld [vmem:[%s201 + $0x12a] sm:$0xff]
      %v830 = vld [vmem:[%s201 + $0x13a] sm:$0xff]
      %v831 = vld [vmem:[%s201 + $0x142] sm:$0xff]
      %v832 = vld [vmem:[%s201 + $0x152] sm:$0xff]
      %v833 = vld [vmem:[%s201 + $0x15a] sm:$0xff]
      %v834 = vld [vmem:[%s201 + $0x16a] sm:$0xff]
      %v835 = vld [vmem:[%s201 + $0x172] sm:$0xff]
      %v836 = vld [vmem:[%s183 + $0x5] sm:$0x1]
      %v837 = vlaneseq
      %v838 = vshrl.u32 %v837, 7
      %v839 = vsub.s32 0, %v838
      %v840 = vrot.slane %v836, %v839
      %v841 = vmul.f32 %v804, %v840
      %v842 = vmul.f32 %v805, %v840
      %v843 = vmul.f32 %v806, %v840
      %v844 = vmul.f32 %v807, %v840
      %v845 = vmul.f32 %v808, %v840
      %v846 = vmul.f32 %v809, %v840
      %v847 = vmul.f32 %v810, %v840
      %v848 = vmul.f32 %v811, %v840
      %v849 = vmul.f32 %v812, %v840
      %v850 = vmul.f32 %v813, %v840
      %v851 = vmul.f32 %v814, %v840
      %v852 = vmul.f32 %v815, %v840
      %v853 = vmul.f32 %v816, %v840
      %v854 = vmul.f32 %v817, %v840
      %v855 = vmul.f32 %v818, %v840
      %v856 = vmul.f32 %v819, %v840
      %v857 = vmul.f32 %v820, %v840
      %v858 = vmul.f32 %v821, %v840
      %v859 = vmul.f32 %v822, %v840
      %v860 = vmul.f32 %v823, %v840
      %v861 = vmul.f32 %v824, %v840
      %v862 = vmul.f32 %v825, %v840
      %v863 = vmul.f32 %v826, %v840
      %v864 = vmul.f32 %v827, %v840
      %v865 = vmul.f32 %v828, %v840
      %v866 = vmul.f32 %v829, %v840
      %v867 = vmul.f32 %v830, %v840
      %v868 = vmul.f32 %v831, %v840
      %v869 = vmul.f32 %v832, %v840
      %v870 = vmul.f32 %v833, %v840
      %v871 = vmul.f32 %v834, %v840
      %v872 = vmul.f32 %v835, %v840
      %v873 = vadd.f32 %v772, %v841
      %v874 = vadd.f32 %v773, %v842
      %v875 = vadd.f32 %v774, %v843
      %v876 = vadd.f32 %v775, %v844
      %v877 = vadd.f32 %v776, %v845
      %v878 = vadd.f32 %v777, %v846
      %v879 = vadd.f32 %v778, %v847
      %v880 = vadd.f32 %v779, %v848
      %v881 = vadd.f32 %v780, %v849
      %v882 = vadd.f32 %v781, %v850
      %v883 = vadd.f32 %v782, %v851
      %v884 = vadd.f32 %v783, %v852
      %v885 = vadd.f32 %v784, %v853
      %v886 = vadd.f32 %v785, %v854
      %v887 = vadd.f32 %v786, %v855
      %v888 = vadd.f32 %v787, %v856
      %v889 = vadd.f32 %v788, %v857
      %v890 = vadd.f32 %v789, %v858
      %v891 = vadd.f32 %v790, %v859
      %v892 = vadd.f32 %v791, %v860
      %v893 = vadd.f32 %v792, %v861
      %v894 = vadd.f32 %v793, %v862
      %v895 = vadd.f32 %v794, %v863
      %v896 = vadd.f32 %v795, %v864
      %v897 = vadd.f32 %v796, %v865
      %v898 = vadd.f32 %v797, %v866
      %v899 = vadd.f32 %v798, %v867
      %v900 = vadd.f32 %v799, %v868
      %v901 = vadd.f32 %v800, %v869
      %v902 = vadd.f32 %v801, %v870
      %v903 = vadd.f32 %v802, %v871
      %v904 = vadd.f32 %v803, %v872
      %s905 = scalar_lea.vmem [#allocation2], 48
      %v906 = vld [vmem:[%s905] sm:$0xff]
      %v907 = vld [vmem:[%s905 + $0x8] sm:$0xff]
      %v908 = vld [vmem:[%s905 + $0x18] sm:$0xff]
      %v909 = vld [vmem:[%s905 + $0x20] sm:$0xff]
      %v910 = vld [vmem:[%s905 + $0x30] sm:$0xff]
      %v911 = vld [vmem:[%s905 + $0x38] sm:$0xff]
      %v912 = vld [vmem:[%s905 + $0x48] sm:$0xff]
      %v913 = vld [vmem:[%s905 + $0x50] sm:$0xff]
      %v914 = vld [vmem:[%s905 + $0x60] sm:$0xff]
      %v915 = vld [vmem:[%s905 + $0x68] sm:$0xff]
      %v916 = vld [vmem:[%s905 + $0x78] sm:$0xff]
      %v917 = vld [vmem:[%s905 + $0x80] sm:$0xff]
      %v918 = vld [vmem:[%s905 + $0x90] sm:$0xff]
      %v919 = vld [vmem:[%s905 + $0x98] sm:$0xff]
      %v920 = vld [vmem:[%s905 + $0xa8] sm:$0xff]
      %v921 = vld [vmem:[%s905 + $0xb0] sm:$0xff]
      %v922 = vld [vmem:[%s905 + $0xc0] sm:$0xff]
      %v923 = vld [vmem:[%s905 + $0xc8] sm:$0xff]
      %v924 = vld [vmem:[%s905 + $0xd8] sm:$0xff]
      %v925 = vld [vmem:[%s905 + $0xe0] sm:$0xff]
      %v926 = vld [vmem:[%s905 + $0xf0] sm:$0xff]
      %v927 = vld [vmem:[%s905 + $0xf8] sm:$0xff]
      %v928 = vld [vmem:[%s905 + $0x108] sm:$0xff]
      %v929 = vld [vmem:[%s905 + $0x110] sm:$0xff]
      %v930 = vld [vmem:[%s905 + $0x120] sm:$0xff]
      %v931 = vld [vmem:[%s905 + $0x128] sm:$0xff]
      %v932 = vld [vmem:[%s905 + $0x138] sm:$0xff]
      %v933 = vld [vmem:[%s905 + $0x140] sm:$0xff]
      %v934 = vld [vmem:[%s905 + $0x150] sm:$0xff]
      %v935 = vld [vmem:[%s905 + $0x158] sm:$0xff]
      %v936 = vld [vmem:[%s905 + $0x168] sm:$0xff]
      %v937 = vld [vmem:[%s905 + $0x170] sm:$0xff]
      %v938 = vld [vmem:[%s183 + $0x6] sm:$0x1]
      %v939 = vlaneseq
      %v940 = vshrl.u32 %v939, 7
      %v941 = vsub.s32 0, %v940
      %v942 = vrot.slane %v938, %v941
      %v943 = vmul.f32 %v906, %v942
      %v944 = vmul.f32 %v907, %v942
      %v945 = vmul.f32 %v908, %v942
      %v946 = vmul.f32 %v909, %v942
      %v947 = vmul.f32 %v910, %v942
      %v948 = vmul.f32 %v911, %v942
      %v949 = vmul.f32 %v912, %v942
      %v950 = vmul.f32 %v913, %v942
      %v951 = vmul.f32 %v914, %v942
      %v952 = vmul.f32 %v915, %v942
      %v953 = vmul.f32 %v916, %v942
      %v954 = vmul.f32 %v917, %v942
      %v955 = vmul.f32 %v918, %v942
      %v956 = vmul.f32 %v919, %v942
      %v957 = vmul.f32 %v920, %v942
      %v958 = vmul.f32 %v921, %v942
      %v959 = vmul.f32 %v922, %v942
      %v960 = vmul.f32 %v923, %v942
      %v961 = vmul.f32 %v924, %v942
      %v962 = vmul.f32 %v925, %v942
      %v963 = vmul.f32 %v926, %v942
      %v964 = vmul.f32 %v927, %v942
      %v965 = vmul.f32 %v928, %v942
      %v966 = vmul.f32 %v929, %v942
      %v967 = vmul.f32 %v930, %v942
      %v968 = vmul.f32 %v931, %v942
      %v969 = vmul.f32 %v932, %v942
      %v970 = vmul.f32 %v933, %v942
      %v971 = vmul.f32 %v934, %v942
      %v972 = vmul.f32 %v935, %v942
      %v973 = vmul.f32 %v936, %v942
      %v974 = vmul.f32 %v937, %v942
      %v975 = vadd.f32 %v873, %v943
      %v976 = vadd.f32 %v874, %v944
      %v977 = vadd.f32 %v875, %v945
      %v978 = vadd.f32 %v876, %v946
      %v979 = vadd.f32 %v877, %v947
      %v980 = vadd.f32 %v878, %v948
      %v981 = vadd.f32 %v879, %v949
      %v982 = vadd.f32 %v880, %v950
      %v983 = vadd.f32 %v881, %v951
      %v984 = vadd.f32 %v882, %v952
      %v985 = vadd.f32 %v883, %v953
      %v986 = vadd.f32 %v884, %v954
      %v987 = vadd.f32 %v885, %v955
      %v988 = vadd.f32 %v886, %v956
      %v989 = vadd.f32 %v887, %v957
      %v990 = vadd.f32 %v888, %v958
      %v991 = vadd.f32 %v889, %v959
      %v992 = vadd.f32 %v890, %v960
      %v993 = vadd.f32 %v891, %v961
      %v994 = vadd.f32 %v892, %v962
      %v995 = vadd.f32 %v893, %v963
      %v996 = vadd.f32 %v894, %v964
      %v997 = vadd.f32 %v895, %v965
      %v998 = vadd.f32 %v896, %v966
      %v999 = vadd.f32 %v897, %v967
      %v1000 = vadd.f32 %v898, %v968
      %v1001 = vadd.f32 %v899, %v969
      %v1002 = vadd.f32 %v900, %v970
      %v1003 = vadd.f32 %v901, %v971
      %v1004 = vadd.f32 %v902, %v972
      %v1005 = vadd.f32 %v903, %v973
      %v1006 = vadd.f32 %v904, %v974
      %v1007 = vld [vmem:[%s905 + $0x1] sm:$0xff]
      %v1008 = vld [vmem:[%s905 + $0x9] sm:$0xff]
      %v1009 = vld [vmem:[%s905 + $0x19] sm:$0xff]
      %v1010 = vld [vmem:[%s905 + $0x21] sm:$0xff]
      %v1011 = vld [vmem:[%s905 + $0x31] sm:$0xff]
      %v1012 = vld [vmem:[%s905 + $0x39] sm:$0xff]
      %v1013 = vld [vmem:[%s905 + $0x49] sm:$0xff]
      %v1014 = vld [vmem:[%s905 + $0x51] sm:$0xff]
      %v1015 = vld [vmem:[%s905 + $0x61] sm:$0xff]
      %v1016 = vld [vmem:[%s905 + $0x69] sm:$0xff]
      %v1017 = vld [vmem:[%s905 + $0x79] sm:$0xff]
      %v1018 = vld [vmem:[%s905 + $0x81] sm:$0xff]
      %v1019 = vld [vmem:[%s905 + $0x91] sm:$0xff]
      %v1020 = vld [vmem:[%s905 + $0x99] sm:$0xff]
      %v1021 = vld [vmem:[%s905 + $0xa9] sm:$0xff]
      %v1022 = vld [vmem:[%s905 + $0xb1] sm:$0xff]
      %v1023 = vld [vmem:[%s905 + $0xc1] sm:$0xff]
      %v1024 = vld [vmem:[%s905 + $0xc9] sm:$0xff]
      %v1025 = vld [vmem:[%s905 + $0xd9] sm:$0xff]
      %v1026 = vld [vmem:[%s905 + $0xe1] sm:$0xff]
      %v1027 = vld [vmem:[%s905 + $0xf1] sm:$0xff]
      %v1028 = vld [vmem:[%s905 + $0xf9] sm:$0xff]
      %v1029 = vld [vmem:[%s905 + $0x109] sm:$0xff]
      %v1030 = vld [vmem:[%s905 + $0x111] sm:$0xff]
      %v1031 = vld [vmem:[%s905 + $0x121] sm:$0xff]
      %v1032 = vld [vmem:[%s905 + $0x129] sm:$0xff]
      %v1033 = vld [vmem:[%s905 + $0x139] sm:$0xff]
      %v1034 = vld [vmem:[%s905 + $0x141] sm:$0xff]
      %v1035 = vld [vmem:[%s905 + $0x151] sm:$0xff]
      %v1036 = vld [vmem:[%s905 + $0x159] sm:$0xff]
      %v1037 = vld [vmem:[%s905 + $0x169] sm:$0xff]
      %v1038 = vld [vmem:[%s905 + $0x171] sm:$0xff]
      %v1039 = vld [vmem:[%s183 + $0x7] sm:$0x1]
      %v1040 = vlaneseq
      %v1041 = vshrl.u32 %v1040, 7
      %v1042 = vsub.s32 0, %v1041
      %v1043 = vrot.slane %v1039, %v1042
      %v1044 = vmul.f32 %v1007, %v1043
      %v1045 = vmul.f32 %v1008, %v1043
      %v1046 = vmul.f32 %v1009, %v1043
      %v1047 = vmul.f32 %v1010, %v1043
      %v1048 = vmul.f32 %v1011, %v1043
      %v1049 = vmul.f32 %v1012, %v1043
      %v1050 = vmul.f32 %v1013, %v1043
      %v1051 = vmul.f32 %v1014, %v1043
      %v1052 = vmul.f32 %v1015, %v1043
      %v1053 = vmul.f32 %v1016, %v1043
      %v1054 = vmul.f32 %v1017, %v1043
      %v1055 = vmul.f32 %v1018, %v1043
      %v1056 = vmul.f32 %v1019, %v1043
      %v1057 = vmul.f32 %v1020, %v1043
      %v1058 = vmul.f32 %v1021, %v1043
      %v1059 = vmul.f32 %v1022, %v1043
      %v1060 = vmul.f32 %v1023, %v1043
      %v1061 = vmul.f32 %v1024, %v1043
      %v1062 = vmul.f32 %v1025, %v1043
      %v1063 = vmul.f32 %v1026, %v1043
      %v1064 = vmul.f32 %v1027, %v1043
      %v1065 = vmul.f32 %v1028, %v1043
      %v1066 = vmul.f32 %v1029, %v1043
      %v1067 = vmul.f32 %v1030, %v1043
      %v1068 = vmul.f32 %v1031, %v1043
      %v1069 = vmul.f32 %v1032, %v1043
      %v1070 = vmul.f32 %v1033, %v1043
      %v1071 = vmul.f32 %v1034, %v1043
      %v1072 = vmul.f32 %v1035, %v1043
      %v1073 = vmul.f32 %v1036, %v1043
      %v1074 = vmul.f32 %v1037, %v1043
      %v1075 = vmul.f32 %v1038, %v1043
      %v1076 = vadd.f32 %v975, %v1044
      %v1077 = vadd.f32 %v976, %v1045
      %v1078 = vadd.f32 %v977, %v1046
      %v1079 = vadd.f32 %v978, %v1047
      %v1080 = vadd.f32 %v979, %v1048
      %v1081 = vadd.f32 %v980, %v1049
      %v1082 = vadd.f32 %v981, %v1050
      %v1083 = vadd.f32 %v982, %v1051
      %v1084 = vadd.f32 %v983, %v1052
      %v1085 = vadd.f32 %v984, %v1053
      %v1086 = vadd.f32 %v985, %v1054
      %v1087 = vadd.f32 %v986, %v1055
      %v1088 = vadd.f32 %v987, %v1056
      %v1089 = vadd.f32 %v988, %v1057
      %v1090 = vadd.f32 %v989, %v1058
      %v1091 = vadd.f32 %v990, %v1059
      %v1092 = vadd.f32 %v991, %v1060
      %v1093 = vadd.f32 %v992, %v1061
      %v1094 = vadd.f32 %v993, %v1062
      %v1095 = vadd.f32 %v994, %v1063
      %v1096 = vadd.f32 %v995, %v1064
      %v1097 = vadd.f32 %v996, %v1065
      %v1098 = vadd.f32 %v997, %v1066
      %v1099 = vadd.f32 %v998, %v1067
      %v1100 = vadd.f32 %v999, %v1068
      %v1101 = vadd.f32 %v1000, %v1069
      %v1102 = vadd.f32 %v1001, %v1070
      %v1103 = vadd.f32 %v1002, %v1071
      %v1104 = vadd.f32 %v1003, %v1072
      %v1105 = vadd.f32 %v1004, %v1073
      %v1106 = vadd.f32 %v1005, %v1074
      %v1107 = vadd.f32 %v1006, %v1075
      %v1108 = vld [vmem:[%s905 + $0x2] sm:$0xff]
      %v1109 = vld [vmem:[%s905 + $0xa] sm:$0xff]
      %v1110 = vld [vmem:[%s905 + $0x1a] sm:$0xff]
      %v1111 = vld [vmem:[%s905 + $0x22] sm:$0xff]
      %v1112 = vld [vmem:[%s905 + $0x32] sm:$0xff]
      %v1113 = vld [vmem:[%s905 + $0x3a] sm:$0xff]
      %v1114 = vld [vmem:[%s905 + $0x4a] sm:$0xff]
      %v1115 = vld [vmem:[%s905 + $0x52] sm:$0xff]
      %v1116 = vld [vmem:[%s905 + $0x62] sm:$0xff]
      %v1117 = vld [vmem:[%s905 + $0x6a] sm:$0xff]
      %v1118 = vld [vmem:[%s905 + $0x7a] sm:$0xff]
      %v1119 = vld [vmem:[%s905 + $0x82] sm:$0xff]
      %v1120 = vld [vmem:[%s905 + $0x92] sm:$0xff]
      %v1121 = vld [vmem:[%s905 + $0x9a] sm:$0xff]
      %v1122 = vld [vmem:[%s905 + $0xaa] sm:$0xff]
      %v1123 = vld [vmem:[%s905 + $0xb2] sm:$0xff]
      %v1124 = vld [vmem:[%s905 + $0xc2] sm:$0xff]
      %v1125 = vld [vmem:[%s905 + $0xca] sm:$0xff]
      %v1126 = vld [vmem:[%s905 + $0xda] sm:$0xff]
      %v1127 = vld [vmem:[%s905 + $0xe2] sm:$0xff]
      %v1128 = vld [vmem:[%s905 + $0xf2] sm:$0xff]
      %v1129 = vld [vmem:[%s905 + $0xfa] sm:$0xff]
      %v1130 = vld [vmem:[%s905 + $0x10a] sm:$0xff]
      %v1131 = vld [vmem:[%s905 + $0x112] sm:$0xff]
      %v1132 = vld [vmem:[%s905 + $0x122] sm:$0xff]
      %v1133 = vld [vmem:[%s905 + $0x12a] sm:$0xff]
      %v1134 = vld [vmem:[%s905 + $0x13a] sm:$0xff]
      %v1135 = vld [vmem:[%s905 + $0x142] sm:$0xff]
      %v1136 = vld [vmem:[%s905 + $0x152] sm:$0xff]
      %v1137 = vld [vmem:[%s905 + $0x15a] sm:$0xff]
      %v1138 = vld [vmem:[%s905 + $0x16a] sm:$0xff]
      %v1139 = vld [vmem:[%s905 + $0x172] sm:$0xff]
      %v1140 = vld [vmem:[%s183 + $0x8] sm:$0x1]
      %v1141 = vlaneseq
      %v1142 = vshrl.u32 %v1141, 7
      %v1143 = vsub.s32 0, %v1142
      %v1144 = vrot.slane %v1140, %v1143
      %v1145 = vmul.f32 %v1108, %v1144
      %v1146 = vmul.f32 %v1109, %v1144
      %v1147 = vmul.f32 %v1110, %v1144
      %v1148 = vmul.f32 %v1111, %v1144
      %v1149 = vmul.f32 %v1112, %v1144
      %v1150 = vmul.f32 %v1113, %v1144
      %v1151 = vmul.f32 %v1114, %v1144
      %v1152 = vmul.f32 %v1115, %v1144
      %v1153 = vmul.f32 %v1116, %v1144
      %v1154 = vmul.f32 %v1117, %v1144
      %v1155 = vmul.f32 %v1118, %v1144
      %v1156 = vmul.f32 %v1119, %v1144
      %v1157 = vmul.f32 %v1120, %v1144
      %v1158 = vmul.f32 %v1121, %v1144
      %v1159 = vmul.f32 %v1122, %v1144
      %v1160 = vmul.f32 %v1123, %v1144
      %v1161 = vmul.f32 %v1124, %v1144
      %v1162 = vmul.f32 %v1125, %v1144
      %v1163 = vmul.f32 %v1126, %v1144
      %v1164 = vmul.f32 %v1127, %v1144
      %v1165 = vmul.f32 %v1128, %v1144
      %v1166 = vmul.f32 %v1129, %v1144
      %v1167 = vmul.f32 %v1130, %v1144
      %v1168 = vmul.f32 %v1131, %v1144
      %v1169 = vmul.f32 %v1132, %v1144
      %v1170 = vmul.f32 %v1133, %v1144
      %v1171 = vmul.f32 %v1134, %v1144
      %v1172 = vmul.f32 %v1135, %v1144
      %v1173 = vmul.f32 %v1136, %v1144
      %v1174 = vmul.f32 %v1137, %v1144
      %v1175 = vmul.f32 %v1138, %v1144
      %v1176 = vmul.f32 %v1139, %v1144
      %v1177 = vadd.f32 %v1076, %v1145
      %v1178 = vadd.f32 %v1077, %v1146
      %v1179 = vadd.f32 %v1078, %v1147
      %v1180 = vadd.f32 %v1079, %v1148
      %v1181 = vadd.f32 %v1080, %v1149
      %v1182 = vadd.f32 %v1081, %v1150
      %v1183 = vadd.f32 %v1082, %v1151
      %v1184 = vadd.f32 %v1083, %v1152
      %v1185 = vadd.f32 %v1084, %v1153
      %v1186 = vadd.f32 %v1085, %v1154
      %v1187 = vadd.f32 %v1086, %v1155
      %v1188 = vadd.f32 %v1087, %v1156
      %v1189 = vadd.f32 %v1088, %v1157
      %v1190 = vadd.f32 %v1089, %v1158
      %v1191 = vadd.f32 %v1090, %v1159
      %v1192 = vadd.f32 %v1091, %v1160
      %v1193 = vadd.f32 %v1092, %v1161
      %v1194 = vadd.f32 %v1093, %v1162
      %v1195 = vadd.f32 %v1094, %v1163
      %v1196 = vadd.f32 %v1095, %v1164
      %v1197 = vadd.f32 %v1096, %v1165
      %v1198 = vadd.f32 %v1097, %v1166
      %v1199 = vadd.f32 %v1098, %v1167
      %v1200 = vadd.f32 %v1099, %v1168
      %v1201 = vadd.f32 %v1100, %v1169
      %v1202 = vadd.f32 %v1101, %v1170
      %v1203 = vadd.f32 %v1102, %v1171
      %v1204 = vadd.f32 %v1103, %v1172
      %v1205 = vadd.f32 %v1104, %v1173
      %v1206 = vadd.f32 %v1105, %v1174
      %v1207 = vadd.f32 %v1106, %v1175
      %v1208 = vadd.f32 %v1107, %v1176
      %1209 = vst.msk [vmem:[%s191] sm:$0xff] %vm192, %v1177
      %1210 = vst.msk [vmem:[%s191 + $0x8] sm:$0xff] %vm192, %v1178
      %1211 = vst.msk [vmem:[%s191 + $0x10] sm:$0xff] %vm192, %v1179
      %1212 = vst.msk [vmem:[%s191 + $0x18] sm:$0xff] %vm192, %v1180
      %1213 = vst.msk [vmem:[%s191 + $0x20] sm:$0xff] %vm192, %v1181
      %1214 = vst.msk [vmem:[%s191 + $0x28] sm:$0xff] %vm192, %v1182
      %1215 = vst.msk [vmem:[%s191 + $0x30] sm:$0xff] %vm192, %v1183
      %1216 = vst.msk [vmem:[%s191 + $0x38] sm:$0xff] %vm192, %v1184
      %1217 = vst.msk [vmem:[%s191 + $0x40] sm:$0xff] %vm192, %v1185
      %1218 = vst.msk [vmem:[%s191 + $0x48] sm:$0xff] %vm192, %v1186
      %1219 = vst.msk [vmem:[%s191 + $0x50] sm:$0xff] %vm192, %v1187
      %1220 = vst.msk [vmem:[%s191 + $0x58] sm:$0xff] %vm192, %v1188
      %1221 = vst.msk [vmem:[%s191 + $0x60] sm:$0xff] %vm192, %v1189
      %1222 = vst.msk [vmem:[%s191 + $0x68] sm:$0xff] %vm192, %v1190
      %1223 = vst.msk [vmem:[%s191 + $0x70] sm:$0xff] %vm192, %v1191
      %1224 = vst.msk [vmem:[%s191 + $0x78] sm:$0xff] %vm192, %v1192
      %1225 = vst.msk [vmem:[%s191 + $0x80] sm:$0xff] %vm192, %v1193
      %1226 = vst.msk [vmem:[%s191 + $0x88] sm:$0xff] %vm192, %v1194
      %1227 = vst.msk [vmem:[%s191 + $0x90] sm:$0xff] %vm192, %v1195
      %1228 = vst.msk [vmem:[%s191 + $0x98] sm:$0xff] %vm192, %v1196
      %1229 = vst.msk [vmem:[%s191 + $0xa0] sm:$0xff] %vm192, %v1197
      %1230 = vst.msk [vmem:[%s191 + $0xa8] sm:$0xff] %vm192, %v1198
      %1231 = vst.msk [vmem:[%s191 + $0xb0] sm:$0xff] %vm192, %v1199
      %1232 = vst.msk [vmem:[%s191 + $0xb8] sm:$0xff] %vm192, %v1200
      %1233 = vst.msk [vmem:[%s191 + $0xc0] sm:$0xff] %vm192, %v1201
      %1234 = vst.msk [vmem:[%s191 + $0xc8] sm:$0xff] %vm192, %v1202
      %1235 = vst.msk [vmem:[%s191 + $0xd0] sm:$0xff] %vm192, %v1203
      %1236 = vst.msk [vmem:[%s191 + $0xd8] sm:$0xff] %vm192, %v1204
      %1237 = vst.msk [vmem:[%s191 + $0xe0] sm:$0xff] %vm192, %v1205
      %1238 = vst.msk [vmem:[%s191 + $0xe8] sm:$0xff] %vm192, %v1206
      %1239 = vst.msk [vmem:[%s191 + $0xf0] sm:$0xff] %vm192, %v1207
      %1240 = vst.msk [vmem:[%s191 + $0xf8] sm:$0xff] %vm192, %v1208
      %p1241 = scmp.lt.s32.totalorder %s17, 1
      %s1242 = scalar_select %p1241, %s17, 1
      %p1243 = scmp.lt.s32.totalorder %s18, 0
      %s1244 = scalar_select %p1243, %s18, 0
      %s1245 = smul.addr %s1242, 32
      %s1246 = sadd.s32 %s1244, %s1245
      %s1247 = smul.addr %s1246, 8
      %s1248 = scalar_lea.vmem %s2, %s1247
      // Predicated region
      $region29: #{tpu_custom_call.1} parent=27 // pred_check
        %p1249 = pneg %p99
      $region30: #{tpu_custom_call.1} parent=27 // pred_check_branch
        %1251 = sbr.rel (%p1249) target = $region32
      $region31: #{tpu_custom_call.1} parent=27 // pred_region
        _
      $region32: #{tpu_custom_call.1} parent=27 // pred_fallthru
        _
    $region28: #{tpu_custom_call.1} parent=5 // pred_fallthru
      _
    %p1252 = scmp.le.s32.totalorder 2, %s8
    // Predicated region
    $region33: #{tpu_custom_call.1} parent=5 // pred_check
      %p1253 = pneg %p1252
    $region34: #{tpu_custom_call.1} parent=5 // pred_check_branch
      %1255 = sbr.rel (%p1253) target = $region36
    $region35: #{tpu_custom_call.1} parent=5 // pred_region
      %s1256 = ssub.s32 %s8, 2
      // Predicated region
      $region37: #{tpu_custom_call.1} parent=35 // pred_check
        %p1257 = pneg %p105
      $region38: #{tpu_custom_call.1} parent=35 // pred_check_branch
        %1259 = sbr.rel (%p1257) target = $region40
      $region39: #{tpu_custom_call.1} parent=35 // pred_region
        %p1260 = scmp.lt.s32.totalorder %s19, 1
        %s1261 = scalar_select %p1260, %s19, 1
        %p1262 = scmp.lt.s32.totalorder %s20, 0
        %s1263 = scalar_select %p1262, %s20, 0
        %s1264 = smul.addr %s1261, 32
        %s1265 = sadd.s32 %s1263, %s1264
        %s1266 = smul.addr %s1265, 8
        %s1267 = scalar_lea.vmem %s2, %s1266
      $region40: #{tpu_custom_call.1} parent=35 // pred_fallthru
        _
    $region36: #{tpu_custom_call.1} parent=5 // pred_fallthru
      _
  $region6: #{tpu_custom_call.1} parent=0 // loop_footer
    %s12 = sadd.s32 1, %s8
  $region7: #{tpu_custom_call.1} parent=0 // loop_footer_branch
    %7 = sbr.rel target = $region3
  $region8: #{tpu_custom_call.1} parent=0 // loop_exit
    _

</llo_original>
